<compile_context>
chip_gen: v6e
topology: v6e:2x2x1
jax: 0.10.0
libtpu: 0.0.40
codegen_flags: <defaults>
</compile_context>

<pallas_src>
import math
from functools import partial

import numpy as np
import jax
import jax.numpy as jnp
from jax import lax
from jax.experimental import pallas as pl
from jax.experimental.pallas import tpu as pltpu


# ---------------------------------------------------------------------------
# Parameter / buffer construction (pure glue, deterministic)
# ---------------------------------------------------------------------------
def get_freq_indices(method):
    assert method in ['top1', 'top2', 'top4', 'top8', 'top16', 'top32',
                      'bot1', 'bot2', 'bot4', 'bot8', 'bot16', 'bot32',
                      'low1', 'low2', 'low4', 'low8', 'low16', 'low32']
    num_freq = int(method[3:])
    if 'top' in method:
        all_x = [0, 0, 6, 0, 0, 1, 1, 4, 5, 1, 3, 0, 0, 0, 3, 2,
                 4, 6, 3, 5, 5, 2, 6, 5, 5, 3, 3, 4, 2, 2, 6, 1]
        all_y = [0, 1, 0, 5, 2, 0, 2, 0, 0, 6, 0, 4, 6, 3, 5, 2,
                 6, 3, 3, 3, 5, 1, 1, 2, 4, 2, 1, 1, 3, 0, 5, 3]
    elif 'low' in method:
        all_x = [0, 0, 1, 1, 0, 2, 2, 1, 2, 0, 3, 4, 0, 1, 3, 0,
                 1, 2, 3, 4, 5, 0, 1, 2, 3, 4, 5, 6, 1, 2, 3, 4]
        all_y = [0, 1, 0, 1, 2, 0, 1, 2, 2, 3, 0, 0, 4, 3, 1, 5,
                 4, 3, 2, 1, 0, 6, 5, 4, 3, 2, 1, 0, 6, 5, 4, 3]
    else:  # bot
        all_x = [6, 1, 3, 3, 2, 4, 1, 2, 4, 4, 5, 1, 4, 6, 2, 5,
                 6, 1, 6, 2, 2, 4, 3, 3, 5, 5, 6, 2, 5, 5, 3, 6]
        all_y = [6, 4, 4, 6, 6, 3, 1, 4, 4, 5, 6, 5, 2, 2, 5, 1,
                 4, 3, 5, 0, 3, 1, 1, 2, 4, 2, 1, 1, 5, 3, 3, 3]
    return all_x[:num_freq], all_y[:num_freq]


def build_dct_filter(tile_x, tile_y, mapper_x, mapper_y, channel):
    """Same semantics as MultiSpectralDCTLayer.get_dct_filter (float32)."""
    def build_1d(POS, freq):
        pos = np.arange(POS, dtype=np.float64)
        r = np.cos(math.pi * freq * (pos + 0.5) / POS) / math.sqrt(POS)
        if freq != 0:
            r = r * math.sqrt(2)
        return r

    dct = np.zeros((channel, tile_x, tile_y), dtype=np.float32)
    c_part = channel // len(mapper_x)
    for i, (u_x, v_y) in enumerate(zip(mapper_x, mapper_y)):
        fx = build_1d(tile_x, u_x)
        fy = build_1d(tile_y, v_y)
        dct[i * c_part:(i + 1) * c_part] = (fx[:, None] * fy[None, :]).astype(np.float32)
    return jnp.asarray(dct)


def fuse_pool_dct_linear1(dct_weight, w1_t, h, w):
    """Fold avg-pool + DCT-weighted reduction + Linear1 into one (Cr, C*H*W) weight.

    Computed ONCE per parameter set (hoisted out of the forward pass).
    W1_fused_t[r, (c,h,w)] = w1_t[c, r] * dct[c, h//fh, w//fw] / (fh*fw)
    """
    c, dct_h, dct_w = dct_weight.shape
    # TODO(synk): PyTorch adaptive_avg_pool2d also handles non-divisible H/W;
    # only the integer-factor pooling case is folded here.
    assert h % dct_h == 0 and w % dct_w == 0, "supports evenly-dividing pool only"
    fh, fw = h // dct_h, w // dct_w
    cr = w1_t.shape[1]
    dct_full = (jnp.repeat(jnp.repeat(dct_weight, fh, axis=1), fw, axis=2)
                / float(fh * fw))                                    # (C, H, W)
    w1_fused_t = (w1_t.T[:, :, None]                                 # (Cr, C, 1)
                  * dct_full.reshape(c, h * w)[None, :, :]           # (1,  C, HW)
                  ).reshape(cr, c * h * w)                           # (Cr, C*H*W)
    return w1_fused_t


# ---------------------------------------------------------------------------
# Pallas kernel: fused (pool + DCT-reduce + Linear1) matmul, ReLU,
#                tiny Linear2 as VPU FMAs, Sigmoid.
# ---------------------------------------------------------------------------
def msa_kernel(x_ref, w1f_ref, w2_ref, out_ref, *, unroll_cr):
    # x_ref   : (TN, C*H*W)  batch tile of flattened raw input (pipelined)
    # w1f_ref : (Cr, C*H*W)  fused pool+DCT+Linear1 weight, transposed (resident)
    # w2_ref  : (Cr, C)      second Linear weight, transposed (resident)
    # out_ref : (TN, C)      sigmoid channel attention
    h = lax.dot_general(
        x_ref[...], w1f_ref[...],
        dimension_numbers=(((1,), (1,)), ((), ())),      # contract CHW with CHW
        preferred_element_type=jnp.float32)               # (TN, Cr)  MXU, f32 acc
    h = jnp.maximum(h, 0.0)                               # ReLU, stays in regs

    w2 = w2_ref[...].astype(jnp.float32)                  # (Cr, C)
    if unroll_cr:
        # Cr is tiny: a handful of broadcast FMAs over lane-dense (TN, C)
        # vregs beats a >99%-padded MXU matmul.
        o = h[:, 0:1] * w2[0:1, :]
        for r in range(1, w2.shape[0]):                   # static unroll
            o = o + h[:, r:r + 1] * w2[r:r + 1, :]
    else:
        o = jnp.dot(h, w2, preferred_element_type=jnp.float32)

    out_ref[...] = jax.nn.sigmoid(o).astype(out_ref.dtype)


def _pick_block_n(n, chw, itemsize):
    """Batch-tile size: as large as a ~16 MiB double-buffered x tile allows,
    capped at 256, and at ~N/2 so the grid keeps >=2 steps (pipeline overlap +
    one tile per TensorCore on v7x megacore)."""
    if n <= 8:
        return n                                      # single full-extent block
    x_budget = 16 * 1024 * 1024                       # double-buffered x tile budget
    bn = x_budget // (2 * chw * itemsize)
    bn = min(bn, 256)
    bn = min(bn, max(8, ((n + 1) // 2 // 8) * 8))     # >= 2 grid steps
    return max(8, (bn // 8) * 8)


@partial(jax.jit, static_argnames=("compute_dtype", "block_n"))
def multi_spectral_attention(x, w1_fused_t, w2_t, *,
                             compute_dtype=jnp.float32, block_n=None):
    """x: (N, C, H, W).  Returns channel attention y of shape (N, C, 1, 1)."""
    n, c, h, w = x.shape
    chw = c * h * w
    cr = w1_fused_t.shape[0]
    assert w1_fused_t.shape[1] == chw
    assert w2_t.shape == (cr, c)

    x_flat = x.reshape(n, chw)
    if x_flat.dtype != compute_dtype:
        # TODO(synk): on v6e/v7x feed x already in bf16 so this cast fuses into
        # the producer instead of adding an extra HBM pass.
        x_flat = x_flat.astype(compute_dtype)
    w1f = w1_fused_t.astype(compute_dtype)
    w2 = w2_t.astype(jnp.float32)

    bn = block_n if block_n is not None else _pick_block_n(
        n, chw, jnp.dtype(compute_dtype).itemsize)
    grid = (pl.cdiv(n, bn),)                          # ragged last block: no jnp.pad,
                                                      # Pallas masks the partial writeback
    kernel = partial(msa_kernel, unroll_cr=(cr <= 16))

    out = pl.pallas_call(
        kernel,
        out_shape=jax.ShapeDtypeStruct((n, c), jnp.float32),
        grid_spec=pltpu.PrefetchScalarGridSpec(
            num_scalar_prefetch=0,
            grid=grid,
            in_specs=[
                pl.BlockSpec((bn, chw), lambda i: (i, 0)),   # x tile (pipelined)
                pl.BlockSpec((cr, chw), lambda i: (0, 0)),   # fused W1^T (resident, sublane-padded only)
                pl.BlockSpec((cr, c), lambda i: (0, 0)),     # W2^T (resident, tiny)
            ],
            out_specs=pl.BlockSpec((bn, c), lambda i: (i, 0)),
        ),
        compiler_params=pltpu.CompilerParams(
            # batch axis is independent -> shard across both TCs on v7x
            dimension_semantics=("parallel",),
            # past v5e's 16 MiB default scoped limit; well under v7x's 64 MiB physical
            vmem_limit_bytes=48 * 1024 * 1024,
        ),
    )(x_flat, w1f, w2)

    return out.reshape(n, c, 1, 1)


# ---------------------------------------------------------------------------
# Pure-JAX reference (faithful to the PyTorch module's op order)
# ---------------------------------------------------------------------------
def reference(x, dct_weight, w1_t, w2_t, dct_h, dct_w):
    n, c, h, w = x.shape
    xp = x
    if h != dct_h or w != dct_w:
        xp = x.reshape(n, c, dct_h, h // dct_h, dct_w, w // dct_w).mean(axis=(3, 5))
    y = jnp.sum(xp * dct_weight[None], axis=(2, 3))
    y = jnp.maximum(y @ w1_t, 0.0) @ w2_t
    return jax.nn.sigmoid(y).reshape(n, c, 1, 1)


if __name__ == "__main__":
    # Module config: channel=32, dct_h=dct_w=7, reduction=16, freq_sel='top16'
    channel, dct_h, dct_w, reduction = 32, 7, 7, 16
    freq_sel_method = 'top16'

    mapper_x, mapper_y = get_freq_indices(freq_sel_method)
    mapper_x = [mx * (dct_h // 7) for mx in mapper_x]
    mapper_y = [my * (dct_w // 7) for my in mapper_y]
    dct_weight = build_dct_filter(dct_h, dct_w, mapper_x, mapper_y, channel)

    # Deterministic parameter init.
    key = jax.random.PRNGKey(0)
    k1, k2, k3 = jax.random.split(key, 3)
    cr = channel // reduction
    # PyTorch nn.Linear stores weight as (out, in); we pass transposes for y @ W^T.
    w1 = jax.random.normal(k1, (cr, channel), jnp.float32) * 0.1   # fc[0].weight
    w2 = jax.random.normal(k2, (channel, cr), jnp.float32) * 0.1   # fc[2].weight
    w1_t = w1.T  # (channel, cr)
    w2_t = w2.T  # (cr, channel)

    # Input: N=16, C=32, H=W=14 (adaptive avg pool -> 7x7 folded into the fused weight).
    n, hh, ww = 16, 14, 14
    x = jax.random.normal(k3, (n, channel, hh, ww), jnp.float32)

    # Hoisted, once-per-parameter-set fusion of pool + DCT + Linear1.
    w1_fused_t = fuse_pool_dct_linear1(dct_weight, w1_t, hh, ww)   # (Cr, C*H*W)
    w1_fused_t = jax.block_until_ready(w1_fused_t)

    out = multi_spectral_attention(x, w1_fused_t, w2_t)
    out = jax.block_until_ready(out)

    ref = reference(x, dct_weight, w1_t, w2_t, dct_h, dct_w)
    assert out.shape == (n, channel, 1, 1)
    ok = bool(jnp.allclose(out, ref, atol=1e-4, rtol=1e-4))
    assert ok, "Pallas kernel mismatch vs reference"

    print("KERNEL_OK")
</pallas_src>

<mosaic_0001>
module attributes {stable_mosaic.version = 11 : i64} {
  func.func @msa_kernel(%arg0: i32, %arg1: memref<8x6272xf32, #tpu.memory_space<vmem>>, %arg2: memref<2x6272xf32, #tpu.memory_space<vmem>>, %arg3: memref<2x32xf32, #tpu.memory_space<vmem>>, %arg4: memref<8x32xf32, #tpu.memory_space<vmem>>) attributes {dimension_semantics = [#tpu.dimension_semantics<parallel>], iteration_bounds = array<i64: 2>, scalar_prefetch = 0 : i64, scratch_operands = 0 : i64, tpu.core_type = #tpu.core_type<tc>, window_params = [{transform_indices = @transform_0, window_bounds = array<i64: 8, 6272>}, {pipeline_mode = #tpu.pipeline_mode<synchronous>, transform_indices = @transform_1, window_bounds = array<i64: 2, 6272>}, {pipeline_mode = #tpu.pipeline_mode<synchronous>, transform_indices = @transform_2, window_bounds = array<i64: 2, 32>}, {transform_indices = @transform_3, window_bounds = array<i64: 8, 32>}]} {
    %c0 = arith.constant 0 : index
    %c0_0 = arith.constant 0 : index
    %0 = vector.load %arg1[%c0, %c0_0] : memref<8x6272xf32, #tpu.memory_space<vmem>>, vector<8x6272xf32>
    %c0_1 = arith.constant 0 : index
    %c0_2 = arith.constant 0 : index
    %1 = vector.load %arg2[%c0_1, %c0_2] : memref<2x6272xf32, #tpu.memory_space<vmem>>, vector<2x6272xf32>
    %cst = arith.constant dense<0.000000e+00> : vector<8x2xf32>
    %2 = tpu.matmul %0, %1, %cst {dimension_numbers = #tpu.dot_dimension_numbers<[1], [1], [0], [0], [0, 0, 1, 0], [], []>} : vector<8x6272xf32>, vector<2x6272xf32>, vector<8x2xf32> -> vector<8x2xf32>
    %cst_3 = arith.constant 0.000000e+00 : f32
    %3 = vector.broadcast %cst_3 : f32 to vector<8x2xf32>
    %4 = arith.maximumf %2, %3 : vector<8x2xf32>
    %c0_4 = arith.constant 0 : index
    %c0_5 = arith.constant 0 : index
    %5 = vector.load %arg3[%c0_4, %c0_5] : memref<2x32xf32, #tpu.memory_space<vmem>>, vector<2x32xf32>
    %6 = vector.extract_strided_slice %4 {offsets = [0, 0], sizes = [8, 1], strides = [1, 1]} : vector<8x2xf32> to vector<8x1xf32>
    %7 = vector.extract_strided_slice %5 {offsets = [0, 0], sizes = [1, 32], strides = [1, 1]} : vector<2x32xf32> to vector<1x32xf32>
    %8 = vector.broadcast %6 : vector<8x1xf32> to vector<8x32xf32>
    %9 = vector.broadcast %7 : vector<1x32xf32> to vector<8x32xf32>
    %10 = arith.mulf %8, %9 : vector<8x32xf32>
    %11 = vector.extract_strided_slice %4 {offsets = [0, 1], sizes = [8, 1], strides = [1, 1]} : vector<8x2xf32> to vector<8x1xf32>
    %12 = vector.extract_strided_slice %5 {offsets = [1, 0], sizes = [1, 32], strides = [1, 1]} : vector<2x32xf32> to vector<1x32xf32>
    %13 = vector.broadcast %11 : vector<8x1xf32> to vector<8x32xf32>
    %14 = vector.broadcast %12 : vector<1x32xf32> to vector<8x32xf32>
    %15 = arith.mulf %13, %14 : vector<8x32xf32>
    %16 = arith.addf %10, %15 : vector<8x32xf32>
    %17 = arith.negf %16 : vector<8x32xf32>
    %18 = math.exp %17 : vector<8x32xf32>
    %cst_6 = arith.constant 1.000000e+00 : f32
    %19 = vector.broadcast %cst_6 : f32 to vector<8x32xf32>
    %20 = arith.addf %19, %18 : vector<8x32xf32>
    %21 = arith.divf %19, %20 : vector<8x32xf32>
    %c0_7 = arith.constant 0 : index
    %c0_8 = arith.constant 0 : index
    %22 = vector.load %arg4[%c0_7, %c0_8] : memref<8x32xf32, #tpu.memory_space<vmem>>, vector<8x32xf32>
    tpu.vector_store %arg4[%c0_7, %c0_8], %21 {strides = array<i32>} : memref<8x32xf32, #tpu.memory_space<vmem>>, vector<8x32xf32>,
    return
  }
  func.func @transform_0(%arg0: i32) -> (i32, i32) {
    %c0_i32 = arith.constant 0 : i32
    %c0_i32_0 = arith.constant 0 : i32
    return %arg0, %c0_i32 : i32, i32
  }
  func.func @transform_1(%arg0: i32) -> (i32, i32) {
    %c0_i32 = arith.constant 0 : i32
    %c0_i32_0 = arith.constant 0 : i32
    %c0_i32_1 = arith.constant 0 : i32
    return %c0_i32, %c0_i32_0 : i32, i32
  }
  func.func @transform_2(%arg0: i32) -> (i32, i32) {
    %c0_i32 = arith.constant 0 : i32
    %c0_i32_0 = arith.constant 0 : i32
    %c0_i32_1 = arith.constant 0 : i32
    return %c0_i32, %c0_i32_0 : i32, i32
  }
  func.func @transform_3(%arg0: i32) -> (i32, i32) {
    %c0_i32 = arith.constant 0 : i32
    %c0_i32_0 = arith.constant 0 : i32
    return %arg0, %c0_i32 : i32, i32
  }
}

</mosaic_0001>

<llo_original>
// kernel: multi_spectral_attention.1
$region0: #{multi_spectral_attention.1}
  #allocation0 [shape = 'u32[]', space=smem, size = 0x4, offset = 0x4, fixed_abs, tag = 'smem constant byte address 0x4 - core index']
  #allocation1 [shape = 'u32[144,128]{1,0:T(1,128)}', space=vmem, size = 0x12000, scoped, tag = 'internal scratch']
  %s0 = inlined_call_operand.vmem [shape: f32[16,6272], index: 0, kind: input, shape index: {}]
  %s1 = inlined_call_operand.vmem [shape: f32[2,6272], index: 1, kind: input, shape index: {}]
  %s2 = inlined_call_operand.vmem [shape: f32[2,32], index: 2, kind: input, shape index: {}]
  %s3 = inlined_call_operand.hbm [shape: f32[16,32], index: 3, kind: output, shape index: {}]
  %s4 = sld [smem:[#allocation0]]
  $region45: #{multi_spectral_attention.1} parent=0
    _
  %s6 = ssub.s32 1, %s4
  %s7 = scalar_select 0, %s6, %s4
  $region1: #{multi_spectral_attention.1} parent=0
    #allocation2 [shape = 'u8[8192]{0}', space=vmem, size = 0x2000, scoped, tag = 'output window, operand 0']
    #allocation3 [shape = 's32[2]{0}', space=sflag, size = 0x8, scoped, tag = 'scoped memory for multi_spectral_attention.1']
    %8 = vsyncpa [#allocation3], 0
    %s9 = scalar_lea.sflag [#allocation3], 1
    %10 = vsyncpa %s9, 0
    loop: start=0, step=1, limit=4
    $region2: #{multi_spectral_attention.1} parent=1 // loop_pre_header
      _
    $region3: #{multi_spectral_attention.1} parent=1 // loop_header
      %s12 = sphi 0, %s16
      %p13 = scmp.ge.s32.totalorder %s12, 4
      %s22 = sphi 0, %s24
      %s25 = sphi 0, %s22
      %s26 = sphi 0, %s25
      %s42 = sphi 0, %s26
      %s46 = sphi 0, %s46
      %s48 = sphi 0, %s46
      %s49 = sphi 0, %s48
      %s63 = sphi 0, %s49
      %s67 = sphi 0, %s67
      %s69 = sphi 0, %s67
      %s70 = sphi 0, %s69
      %s84 = sphi 0, %s70
      %s90 = sphi 0, %s92
      %s93 = sphi 0, %s90
      %s94 = sphi 0, %s93
      %s110 = sphi 0, %s94
    $region4: #{multi_spectral_attention.1} parent=1 // loop_header_branch
      %15 = sbr.rel (%p13) target = $region8
    $region5: #{multi_spectral_attention.1} parent=1 // loop_body
      %s17 = ssub.s32 %s12, 1
      %s18 = ssub.s32 %s12, 2
      %s19 = sadd.s32 %s12, 1
      %s20 = ssub.s32 %s12, %s19
      %p21 = scmp.eq.s32.totalorder %s20, 0
      %s23 = sadd.s32 %s22, 1
      %s24 = scalar_select %p21, %s22, %s23
      %p27 = pneg %p21
      %p28 = scmp.eq.s32.totalorder %s12, 1
      %p29 = por %p27, %p28
      %p30 = scmp.ne.s32.totalorder %s22, %s25
      %p31 = scmp.eq.s32.totalorder %s12, 0
      %p32 = por %p30, %p31
      %p33 = scmp.ne.s32.totalorder %s22, %s25
      %p34 = scmp.eq.s32.totalorder %s17, 1
      %p35 = por %p33, %p34
      %p36 = scmp.ne.s32.totalorder %s25, %s26
      %p37 = scmp.eq.s32.totalorder %s17, 0
      %p38 = por %p36, %p37
      %p39 = scmp.ne.s32.totalorder %s25, %s26
      %p40 = scmp.eq.s32.totalorder %s18, 1
      %p41 = por %p39, %p40
      %p43 = scmp.ne.s32.totalorder %s26, %s42
      %p44 = scmp.eq.s32.totalorder %s18, 0
      %p45 = por %p43, %p44
      %s47 = sadd.s32 %s46, 1
      %p50 = scmp.eq.s32.totalorder %s12, 1
      %p51 = scmp.ne.s32.totalorder %s46, %s48
      %p52 = scmp.eq.s32.totalorder %s12, 0
      %p53 = por %p51, %p52
      %p54 = scmp.ne.s32.totalorder %s46, %s48
      %p55 = scmp.eq.s32.totalorder %s17, 1
      %p56 = por %p54, %p55
      %p57 = scmp.ne.s32.totalorder %s48, %s49
      %p58 = scmp.eq.s32.totalorder %s17, 0
      %p59 = por %p57, %p58
      %p60 = scmp.ne.s32.totalorder %s48, %s49
      %p61 = scmp.eq.s32.totalorder %s18, 1
      %p62 = por %p60, %p61
      %p64 = scmp.ne.s32.totalorder %s49, %s63
      %p65 = scmp.eq.s32.totalorder %s18, 0
      %p66 = por %p64, %p65
      %s68 = sadd.s32 %s67, 1
      %p71 = scmp.eq.s32.totalorder %s12, 1
      %p72 = scmp.ne.s32.totalorder %s67, %s69
      %p73 = scmp.eq.s32.totalorder %s12, 0
      %p74 = por %p72, %p73
      %p75 = scmp.ne.s32.totalorder %s67, %s69
      %p76 = scmp.eq.s32.totalorder %s17, 1
      %p77 = por %p75, %p76
      %p78 = scmp.ne.s32.totalorder %s69, %s70
      %p79 = scmp.eq.s32.totalorder %s17, 0
      %p80 = por %p78, %p79
      %p81 = scmp.ne.s32.totalorder %s69, %s70
      %p82 = scmp.eq.s32.totalorder %s18, 1
      %p83 = por %p81, %p82
      %p85 = scmp.ne.s32.totalorder %s70, %s84
      %p86 = scmp.eq.s32.totalorder %s18, 0
      %p87 = por %p85, %p86
      %s88 = ssub.s32 %s12, %s19
      %p89 = scmp.eq.s32.totalorder %s88, 0
      %s91 = sadd.s32 %s90, 1
      %s92 = scalar_select %p89, %s90, %s91
      %p95 = pneg %p89
      %p96 = scmp.eq.s32.totalorder %s12, 1
      %p97 = por %p95, %p96
      %p98 = scmp.ne.s32.totalorder %s90, %s93
      %p99 = scmp.eq.s32.totalorder %s12, 0
      %p100 = por %p98, %p99
      %p101 = scmp.ne.s32.totalorder %s90, %s93
      %p102 = scmp.eq.s32.totalorder %s17, 1
      %p103 = por %p101, %p102
      %p104 = scmp.ne.s32.totalorder %s93, %s94
      %p105 = scmp.eq.s32.totalorder %s17, 0
      %p106 = por %p104, %p105
      %p107 = scmp.ne.s32.totalorder %s93, %s94
      %p108 = scmp.eq.s32.totalorder %s18, 1
      %p109 = por %p107, %p108
      %p111 = scmp.ne.s32.totalorder %s94, %s110
      %p112 = scmp.eq.s32.totalorder %s18, 0
      %p113 = por %p111, %p112
      %p114 = scmp.le.s32.totalorder 1, %s12
      %p115 = scmp.lt.s32.totalorder %s12, 3
      %p116 = pnand %p114, %p115
      %p117 = pneg %p116
      // Predicated region
      $region9: #{multi_spectral_attention.1} parent=5 // pred_check
        _
      $region10: #{multi_spectral_attention.1} parent=5 // pred_check_branch
        %119 = sbr.rel (%p116) target = $region12
      $region11: #{multi_spectral_attention.1} parent=5 // pred_region
        %s120 = ssub.s32 %s12, 1
        // Predicated region
        $region13: #{multi_spectral_attention.1} parent=11 // pred_check
          %p121 = pneg %p59
        $region14: #{multi_spectral_attention.1} parent=11 // pred_check_branch
          %123 = sbr.rel (%p121) target = $region16
        $region15: #{multi_spectral_attention.1} parent=11 // pred_region
          _
        $region16: #{multi_spectral_attention.1} parent=11 // pred_fallthru
          _
        // Predicated region
        $region17: #{multi_spectral_attention.1} parent=11 // pred_check
          %p124 = pneg %p80
        $region18: #{multi_spectral_attention.1} parent=11 // pred_check_branch
          %126 = sbr.rel (%p124) target = $region20
        $region19: #{multi_spectral_attention.1} parent=11 // pred_region
          _
        $region20: #{multi_spectral_attention.1} parent=11 // pred_fallthru
          _
      $region12: #{multi_spectral_attention.1} parent=5 // pred_fallthru
        _
      %p127 = scmp.lt.s32.totalorder %s12, 2
      // Predicated region
      $region21: #{multi_spectral_attention.1} parent=5 // pred_check
        %p128 = pneg %p127
      $region22: #{multi_spectral_attention.1} parent=5 // pred_check_branch
        %130 = sbr.rel (%p128) target = $region24
      $region23: #{multi_spectral_attention.1} parent=5 // pred_region
        // Predicated region
        $region25: #{multi_spectral_attention.1} parent=23 // pred_check
          %p131 = pneg %p32
        $region26: #{multi_spectral_attention.1} parent=23 // pred_check_branch
          %133 = sbr.rel (%p131) target = $region28
        $region27: #{multi_spectral_attention.1} parent=23 // pred_region
          %p134 = scmp.lt.s32.totalorder %s12, 1
          %s135 = scalar_select %p134, %s12, 1
          %s136 = smul.addr %s135, 49
          %s137 = smul.addr %s136, 8
          %s138 = scalar_lea.vmem %s0, %s137
        $region28: #{multi_spectral_attention.1} parent=23 // pred_fallthru
          _
      $region24: #{multi_spectral_attention.1} parent=5 // pred_fallthru
        _
      %p139 = scmp.le.s32.totalorder 1, %s12
      %p140 = scmp.lt.s32.totalorder %s12, 3
      %p141 = pnand %p139, %p140
      %p142 = pneg %p141
      // Predicated region
      $region29: #{multi_spectral_attention.1} parent=5 // pred_check
        _
      $region30: #{multi_spectral_attention.1} parent=5 // pred_check_branch
        %144 = sbr.rel (%p141) target = $region32
      $region31: #{multi_spectral_attention.1} parent=5 // pred_region
        %s145 = ssub.s32 %s12, 1
        %p146 = scmp.lt.s32.totalorder %s17, 1
        %s147 = scalar_select %p146, %s17, 1
        %s148 = smul.addr %s147, 49
        %s149 = smul.addr %s148, 8
        %s150 = scalar_lea.vmem %s0, %s149
        %p151 = pneg %p38
        %p152 = pneg %p35
        %p153 = pneg %p59
        %p154 = pneg %p56
        %p155 = pneg %p80
        %p156 = pneg %p77
        %p157 = pneg %p106
        %p158 = pneg %p103
        %s159 = sand.u32 %s93, 1
        %s160 = scalar_lea.sflag [#allocation3], %s159
        %s161 = sand.u32 %s93, 1
        %s162 = smul.addr %s161, 8
        %s163 = scalar_lea.vmem [#allocation2], %s162
        %p164 = scmp.lt.s32.totalorder %s17, 1
        %s165 = scalar_select %p164, %s17, 1
        %s166 = smul.addr %s165, 49
        %s167 = smul.addr %s166, 8
        %s168 = scalar_lea.vmem %s0, %s167
        %v169 = vld [vmem:[%s168] sm:$0xff]
        %v170 = vld [vmem:[%s168 + $0x8] sm:$0xff]
        %v171 = vld [vmem:[%s168 + $0x10] sm:$0xff]
        %v172 = vld [vmem:[%s168 + $0x18] sm:$0xff]
        %v173 = vld [vmem:[%s168 + $0x20] sm:$0xff]
        %v174 = vld [vmem:[%s168 + $0x28] sm:$0xff]
        %v175 = vld [vmem:[%s168 + $0x30] sm:$0xff]
        %v176 = vld [vmem:[%s168 + $0x38] sm:$0xff]
        %v177 = vld [vmem:[%s168 + $0x40] sm:$0xff]
        %v178 = vld [vmem:[%s168 + $0x48] sm:$0xff]
        %v179 = vld [vmem:[%s168 + $0x50] sm:$0xff]
        %v180 = vld [vmem:[%s168 + $0x58] sm:$0xff]
        %v181 = vld [vmem:[%s168 + $0x60] sm:$0xff]
        %v182 = vld [vmem:[%s168 + $0x68] sm:$0xff]
        %v183 = vld [vmem:[%s168 + $0x70] sm:$0xff]
        %v184 = vld [vmem:[%s168 + $0x78] sm:$0xff]
        %v185 = vld [vmem:[%s168 + $0x80] sm:$0xff]
        %v186 = vld [vmem:[%s168 + $0x88] sm:$0xff]
        %v187 = vld [vmem:[%s168 + $0x90] sm:$0xff]
        %v188 = vld [vmem:[%s168 + $0x98] sm:$0xff]
        %v189 = vld [vmem:[%s168 + $0xa0] sm:$0xff]
        %v190 = vld [vmem:[%s168 + $0xa8] sm:$0xff]
        %v191 = vld [vmem:[%s168 + $0xb0] sm:$0xff]
        %v192 = vld [vmem:[%s168 + $0xb8] sm:$0xff]
        %v193 = vld [vmem:[%s168 + $0xc0] sm:$0xff]
        %v194 = vld [vmem:[%s168 + $0xc8] sm:$0xff]
        %v195 = vld [vmem:[%s168 + $0xd0] sm:$0xff]
        %v196 = vld [vmem:[%s168 + $0xd8] sm:$0xff]
        %v197 = vld [vmem:[%s168 + $0xe0] sm:$0xff]
        %v198 = vld [vmem:[%s168 + $0xe8] sm:$0xff]
        %v199 = vld [vmem:[%s168 + $0xf0] sm:$0xff]
        %v200 = vld [vmem:[%s168 + $0xf8] sm:$0xff]
        %v201 = vld [vmem:[%s168 + $0x100] sm:$0xff]
        %v202 = vld [vmem:[%s168 + $0x108] sm:$0xff]
        %v203 = vld [vmem:[%s168 + $0x110] sm:$0xff]
        %v204 = vld [vmem:[%s168 + $0x118] sm:$0xff]
        %v205 = vld [vmem:[%s168 + $0x120] sm:$0xff]
        %v206 = vld [vmem:[%s168 + $0x128] sm:$0xff]
        %v207 = vld [vmem:[%s168 + $0x130] sm:$0xff]
        %v208 = vld [vmem:[%s168 + $0x138] sm:$0xff]
        %v209 = vld [vmem:[%s168 + $0x140] sm:$0xff]
        %v210 = vld [vmem:[%s168 + $0x148] sm:$0xff]
        %v211 = vld [vmem:[%s168 + $0x150] sm:$0xff]
        %v212 = vld [vmem:[%s168 + $0x158] sm:$0xff]
        %v213 = vld [vmem:[%s168 + $0x160] sm:$0xff]
        %v214 = vld [vmem:[%s168 + $0x168] sm:$0xff]
        %v215 = vld [vmem:[%s168 + $0x170] sm:$0xff]
        %v216 = vld [vmem:[%s168 + $0x178] sm:$0xff]
        %v217 = vld [vmem:[%s168 + $0x180] sm:$0xff]
        %v218 = vld [vmem:[%s1] sm:$0xff]
        %v219 = vld [vmem:[%s1 + $0x8] sm:$0xff]
        %v220 = vld [vmem:[%s1 + $0x10] sm:$0xff]
        %v221 = vld [vmem:[%s1 + $0x18] sm:$0xff]
        %v222 = vld [vmem:[%s1 + $0x20] sm:$0xff]
        %v223 = vld [vmem:[%s1 + $0x28] sm:$0xff]
        %v224 = vld [vmem:[%s1 + $0x30] sm:$0xff]
        %v225 = vld [vmem:[%s1 + $0x38] sm:$0xff]
        %v226 = vld [vmem:[%s1 + $0x40] sm:$0xff]
        %v227 = vld [vmem:[%s1 + $0x48] sm:$0xff]
        %v228 = vld [vmem:[%s1 + $0x50] sm:$0xff]
        %v229 = vld [vmem:[%s1 + $0x58] sm:$0xff]
        %v230 = vld [vmem:[%s1 + $0x60] sm:$0x3]
        %v244 = vcombine.high %v218, %v218
        %v246 = vunpack.c.l.s4 1983009808
        %v247 = vunpack.c.0.s8 %v246
        %v248 = vlaneseq
        %v249 = vshrl.u32 %v248, 7
        %v250 = vsub.s32 %v247, %v249
        %v251 = vrot.slane %v218, %v250
        %v253 = vunpack.c.l.s4 1983009808
        %v254 = vunpack.c.0.s8 %v253
        %v255 = vlaneseq
        %v256 = vshrl.u32 %v255, 7
        %v257 = vsub.s32 %v254, %v256
        %v258 = vrot.slane %v244, %v257
        %v259 = vcombine.high %v251, %v251
        %v260 = vcombine.high %v258, %v258
        %v261 = vcombine.high %v219, %v219
        %v263 = vunpack.c.l.s4 1983009808
        %v264 = vunpack.c.0.s8 %v263
        %v265 = vlaneseq
        %v266 = vshrl.u32 %v265, 7
        %v267 = vsub.s32 %v264, %v266
        %v268 = vrot.slane %v219, %v267
        %v270 = vunpack.c.l.s4 1983009808
        %v271 = vunpack.c.0.s8 %v270
        %v272 = vlaneseq
        %v273 = vshrl.u32 %v272, 7
        %v274 = vsub.s32 %v271, %v273
        %v275 = vrot.slane %v261, %v274
        %v276 = vcombine.high %v268, %v268
        %v277 = vcombine.high %v275, %v275
        %v278 = vcombine.high %v220, %v220
        %v280 = vunpack.c.l.s4 1983009808
        %v281 = vunpack.c.0.s8 %v280
        %v282 = vlaneseq
        %v283 = vshrl.u32 %v282, 7
        %v284 = vsub.s32 %v281, %v283
        %v285 = vrot.slane %v220, %v284
        %v287 = vunpack.c.l.s4 1983009808
        %v288 = vunpack.c.0.s8 %v287
        %v289 = vlaneseq
        %v290 = vshrl.u32 %v289, 7
        %v291 = vsub.s32 %v288, %v290
        %v292 = vrot.slane %v278, %v291
        %v293 = vcombine.high %v285, %v285
        %v294 = vcombine.high %v292, %v292
        %v295 = vcombine.high %v221, %v221
        %v297 = vunpack.c.l.s4 1983009808
        %v298 = vunpack.c.0.s8 %v297
        %v299 = vlaneseq
        %v300 = vshrl.u32 %v299, 7
        %v301 = vsub.s32 %v298, %v300
        %v302 = vrot.slane %v221, %v301
        %v304 = vunpack.c.l.s4 1983009808
        %v305 = vunpack.c.0.s8 %v304
        %v306 = vlaneseq
        %v307 = vshrl.u32 %v306, 7
        %v308 = vsub.s32 %v305, %v307
        %v309 = vrot.slane %v295, %v308
        %v310 = vcombine.high %v302, %v302
        %v311 = vcombine.high %v309, %v309
        %v312 = vcombine.high %v222, %v222
        %v314 = vunpack.c.l.s4 1983009808
        %v315 = vunpack.c.0.s8 %v314
        %v316 = vlaneseq
        %v317 = vshrl.u32 %v316, 7
        %v318 = vsub.s32 %v315, %v317
        %v319 = vrot.slane %v222, %v318
        %v321 = vunpack.c.l.s4 1983009808
        %v322 = vunpack.c.0.s8 %v321
        %v323 = vlaneseq
        %v324 = vshrl.u32 %v323, 7
        %v325 = vsub.s32 %v322, %v324
        %v326 = vrot.slane %v312, %v325
        %v327 = vcombine.high %v319, %v319
        %v328 = vcombine.high %v326, %v326
        %v329 = vcombine.high %v223, %v223
        %v331 = vunpack.c.l.s4 1983009808
        %v332 = vunpack.c.0.s8 %v331
        %v333 = vlaneseq
        %v334 = vshrl.u32 %v333, 7
        %v335 = vsub.s32 %v332, %v334
        %v336 = vrot.slane %v223, %v335
        %v338 = vunpack.c.l.s4 1983009808
        %v339 = vunpack.c.0.s8 %v338
        %v340 = vlaneseq
        %v341 = vshrl.u32 %v340, 7
        %v342 = vsub.s32 %v339, %v341
        %v343 = vrot.slane %v329, %v342
        %v344 = vcombine.high %v336, %v336
        %v345 = vcombine.high %v343, %v343
        %v346 = vcombine.high %v224, %v224
        %v348 = vunpack.c.l.s4 1983009808
        %v349 = vunpack.c.0.s8 %v348
        %v350 = vlaneseq
        %v351 = vshrl.u32 %v350, 7
        %v352 = vsub.s32 %v349, %v351
        %v353 = vrot.slane %v224, %v352
        %v355 = vunpack.c.l.s4 1983009808
        %v356 = vunpack.c.0.s8 %v355
        %v357 = vlaneseq
        %v358 = vshrl.u32 %v357, 7
        %v359 = vsub.s32 %v356, %v358
        %v360 = vrot.slane %v346, %v359
        %v361 = vcombine.high %v353, %v353
        %v362 = vcombine.high %v360, %v360
        %v363 = vcombine.high %v225, %v225
        %v365 = vunpack.c.l.s4 1983009808
        %v366 = vunpack.c.0.s8 %v365
        %v367 = vlaneseq
        %v368 = vshrl.u32 %v367, 7
        %v369 = vsub.s32 %v366, %v368
        %v370 = vrot.slane %v225, %v369
        %v372 = vunpack.c.l.s4 1983009808
        %v373 = vunpack.c.0.s8 %v372
        %v374 = vlaneseq
        %v375 = vshrl.u32 %v374, 7
        %v376 = vsub.s32 %v373, %v375
        %v377 = vrot.slane %v363, %v376
        %v378 = vcombine.high %v370, %v370
        %v379 = vcombine.high %v377, %v377
        %v380 = vcombine.high %v226, %v226
        %v382 = vunpack.c.l.s4 1983009808
        %v383 = vunpack.c.0.s8 %v382
        %v384 = vlaneseq
        %v385 = vshrl.u32 %v384, 7
        %v386 = vsub.s32 %v383, %v385
        %v387 = vrot.slane %v226, %v386
        %v389 = vunpack.c.l.s4 1983009808
        %v390 = vunpack.c.0.s8 %v389
        %v391 = vlaneseq
        %v392 = vshrl.u32 %v391, 7
        %v393 = vsub.s32 %v390, %v392
        %v394 = vrot.slane %v380, %v393
        %v395 = vcombine.high %v387, %v387
        %v396 = vcombine.high %v394, %v394
        %v397 = vcombine.high %v227, %v227
        %v399 = vunpack.c.l.s4 1983009808
        %v400 = vunpack.c.0.s8 %v399
        %v401 = vlaneseq
        %v402 = vshrl.u32 %v401, 7
        %v403 = vsub.s32 %v400, %v402
        %v404 = vrot.slane %v227, %v403
        %v406 = vunpack.c.l.s4 1983009808
        %v407 = vunpack.c.0.s8 %v406
        %v408 = vlaneseq
        %v409 = vshrl.u32 %v408, 7
        %v410 = vsub.s32 %v407, %v409
        %v411 = vrot.slane %v397, %v410
        %v412 = vcombine.high %v404, %v404
        %v413 = vcombine.high %v411, %v411
        %v414 = vcombine.high %v228, %v228
        %v416 = vunpack.c.l.s4 1983009808
        %v417 = vunpack.c.0.s8 %v416
        %v418 = vlaneseq
        %v419 = vshrl.u32 %v418, 7
        %v420 = vsub.s32 %v417, %v419
        %v421 = vrot.slane %v228, %v420
        %v423 = vunpack.c.l.s4 1983009808
        %v424 = vunpack.c.0.s8 %v423
        %v425 = vlaneseq
        %v426 = vshrl.u32 %v425, 7
        %v427 = vsub.s32 %v424, %v426
        %v428 = vrot.slane %v414, %v427
        %v429 = vcombine.high %v421, %v421
        %v430 = vcombine.high %v428, %v428
        %v431 = vcombine.high %v229, %v229
        %v433 = vunpack.c.l.s4 1983009808
        %v434 = vunpack.c.0.s8 %v433
        %v435 = vlaneseq
        %v436 = vshrl.u32 %v435, 7
        %v437 = vsub.s32 %v434, %v436
        %v438 = vrot.slane %v229, %v437
        %v440 = vunpack.c.l.s4 1983009808
        %v441 = vunpack.c.0.s8 %v440
        %v442 = vlaneseq
        %v443 = vshrl.u32 %v442, 7
        %v444 = vsub.s32 %v441, %v443
        %v445 = vrot.slane %v431, %v444
        %v446 = vcombine.high %v438, %v438
        %v447 = vcombine.high %v445, %v445
        %v449 = vunpack.c.l.s4 1983009808
        %v450 = vunpack.c.0.s8 %v449
        %v451 = vlaneseq
        %v452 = vshrl.u32 %v451, 7
        %v453 = vsub.s32 %v450, %v452
        %v454 = vrot.slane %v230, %v453
        %504 = vmatprep.subr.mxu0 0.0
        %505 = vmatpush1.xpose.msra.mxu0 0.0
        %506 = vmatprep.subr.mxu0 0.0
        %507 = vmatpush1.xpose.msra.mxu0 0.0
        %508 = vmatprep.subr.mxu0 0.0
        %509 = vmatpush1.xpose.msra.mxu0 0.0
        %510 = vmatprep.subr.mxu0 0.0
        %511 = vmatpush1.xpose.msra.mxu0 0.0
        %512 = vmatprep.subr.mxu0 0.0
        %513 = vmatpush1.xpose.msra.mxu0 0.0
        %514 = vmatprep.subr.mxu0 0.0
        %515 = vmatpush1.xpose.msra.mxu0 0.0
        %516 = vmatprep.subr.mxu0 0.0
        %517 = vmatpush1.xpose.msra.mxu0 0.0
        %518 = vmatprep.subr.mxu0 0.0
        %519 = vmatpush1.xpose.msra.mxu0 0.0
        %520 = vmatprep.subr.mxu0 0.0
        %521 = vmatpush1.xpose.msra.mxu0 0.0
        %522 = vmatprep.subr.mxu0 0.0
        %523 = vmatpush1.xpose.msra.mxu0 0.0
        %524 = vmatprep.subr.mxu0 0.0
        %525 = vmatpush1.xpose.msra.mxu0 0.0
        %526 = vmatprep.subr.mxu0 0.0
        %527 = vmatpush1.xpose.msra.mxu0 0.0
        %528 = vmatprep.subr.mxu0 0.0
        %529 = vmatpush1.xpose.msra.mxu0 0.0
        %530 = vmatprep.subr.mxu0 0.0
        %531 = vmatpush1.xpose.msra.mxu0 0.0
        %532 = vmatprep.subr.mxu0 0.0
        %533 = vmatpush1.xpose.msra.mxu0 0.0
        %534 = vmatprep.subr.mxu0 %v259
        %535 = vmatpush1.xpose.msra.mxu0 %v251
        %536 = vmatprep.subr.mxu0 0.0
        %537 = vmatpush2.xpose.msra.mxu0 0.0
        %538 = vmatprep.subr.mxu0 0.0
        %539 = vmatpush2.xpose.msra.mxu0 0.0
        %540 = vmatprep.subr.mxu0 0.0
        %541 = vmatpush2.xpose.msra.mxu0 0.0
        %542 = vmatprep.subr.mxu0 0.0
        %543 = vmatpush2.xpose.msra.mxu0 0.0
        %544 = vmatprep.subr.mxu0 0.0
        %545 = vmatpush2.xpose.msra.mxu0 0.0
        %546 = vmatprep.subr.mxu0 0.0
        %547 = vmatpush2.xpose.msra.mxu0 0.0
        %548 = vmatprep.subr.mxu0 0.0
        %549 = vmatpush2.xpose.msra.mxu0 0.0
        %550 = vmatprep.subr.mxu0 0.0
        %551 = vmatpush2.xpose.msra.mxu0 0.0
        %552 = vmatprep.subr.mxu0 0.0
        %553 = vmatpush2.xpose.msra.mxu0 0.0
        %554 = vmatprep.subr.mxu0 0.0
        %555 = vmatpush2.xpose.msra.mxu0 0.0
        %556 = vmatprep.subr.mxu0 0.0
        %557 = vmatpush2.xpose.msra.mxu0 0.0
        %558 = vmatprep.subr.mxu0 0.0
        %559 = vmatpush2.xpose.msra.mxu0 0.0
        %560 = vmatprep.subr.mxu0 0.0
        %561 = vmatpush2.xpose.msra.mxu0 0.0
        %562 = vmatprep.subr.mxu0 0.0
        %563 = vmatpush2.xpose.msra.mxu0 0.0
        %564 = vmatprep.subr.mxu0 0.0
        %565 = vmatpush2.xpose.msra.mxu0 0.0
        %566 = vmatprep.subr.mxu0 0.0
        %567 = vmatpush2.xpose.msra.mxu0 0.0
        %568 = vmatprep.mubr.f32.mxu0 %v170
        %569 = vmatmul.mubr.f32.gmra.mxu0 %v169
        %v570 = vpop.f32.mrf.mxu0
        %v571 = vadd.f32 0.0, %v570
        %v572 = vpop.f32.mrf.mxu0
        %573 = vdwg.mxu0
        %574 = vmatprep.subr.mxu0 0.0
        %575 = vmatpush1.xpose.msra.mxu0 0.0
        %576 = vmatprep.subr.mxu0 0.0
        %577 = vmatpush1.xpose.msra.mxu0 0.0
        %578 = vmatprep.subr.mxu0 0.0
        %579 = vmatpush1.xpose.msra.mxu0 0.0
        %580 = vmatprep.subr.mxu0 0.0
        %581 = vmatpush1.xpose.msra.mxu0 0.0
        %582 = vmatprep.subr.mxu0 0.0
        %583 = vmatpush1.xpose.msra.mxu0 0.0
        %584 = vmatprep.subr.mxu0 0.0
        %585 = vmatpush1.xpose.msra.mxu0 0.0
        %586 = vmatprep.subr.mxu0 0.0
        %587 = vmatpush1.xpose.msra.mxu0 0.0
        %588 = vmatprep.subr.mxu0 0.0
        %589 = vmatpush1.xpose.msra.mxu0 0.0
        %590 = vmatprep.subr.mxu0 0.0
        %591 = vmatpush1.xpose.msra.mxu0 0.0
        %592 = vmatprep.subr.mxu0 0.0
        %593 = vmatpush1.xpose.msra.mxu0 0.0
        %594 = vmatprep.subr.mxu0 0.0
        %595 = vmatpush1.xpose.msra.mxu0 0.0
        %596 = vmatprep.subr.mxu0 0.0
        %597 = vmatpush1.xpose.msra.mxu0 0.0
        %598 = vmatprep.subr.mxu0 0.0
        %599 = vmatpush1.xpose.msra.mxu0 0.0
        %600 = vmatprep.subr.mxu0 0.0
        %601 = vmatpush1.xpose.msra.mxu0 0.0
        %602 = vmatprep.subr.mxu0 0.0
        %603 = vmatpush1.xpose.msra.mxu0 0.0
        %604 = vmatprep.subr.mxu0 %v260
        %605 = vmatpush1.xpose.msra.mxu0 %v258
        %606 = vmatprep.subr.mxu0 0.0
        %607 = vmatpush2.xpose.msra.mxu0 0.0
        %608 = vmatprep.subr.mxu0 0.0
        %609 = vmatpush2.xpose.msra.mxu0 0.0
        %610 = vmatprep.subr.mxu0 0.0
        %611 = vmatpush2.xpose.msra.mxu0 0.0
        %612 = vmatprep.subr.mxu0 0.0
        %613 = vmatpush2.xpose.msra.mxu0 0.0
        %614 = vmatprep.subr.mxu0 0.0
        %615 = vmatpush2.xpose.msra.mxu0 0.0
        %616 = vmatprep.subr.mxu0 0.0
        %617 = vmatpush2.xpose.msra.mxu0 0.0
        %618 = vmatprep.subr.mxu0 0.0
        %619 = vmatpush2.xpose.msra.mxu0 0.0
        %620 = vmatprep.subr.mxu0 0.0
        %621 = vmatpush2.xpose.msra.mxu0 0.0
        %622 = vmatprep.subr.mxu0 0.0
        %623 = vmatpush2.xpose.msra.mxu0 0.0
        %624 = vmatprep.subr.mxu0 0.0
        %625 = vmatpush2.xpose.msra.mxu0 0.0
        %626 = vmatprep.subr.mxu0 0.0
        %627 = vmatpush2.xpose.msra.mxu0 0.0
        %628 = vmatprep.subr.mxu0 0.0
        %629 = vmatpush2.xpose.msra.mxu0 0.0
        %630 = vmatprep.subr.mxu0 0.0
        %631 = vmatpush2.xpose.msra.mxu0 0.0
        %632 = vmatprep.subr.mxu0 0.0
        %633 = vmatpush2.xpose.msra.mxu0 0.0
        %634 = vmatprep.subr.mxu0 0.0
        %635 = vmatpush2.xpose.msra.mxu0 0.0
        %636 = vmatprep.subr.mxu0 0.0
        %637 = vmatpush2.xpose.msra.mxu0 0.0
        %638 = vmatprep.mubr.f32.mxu0 %v172
        %639 = vmatmul.mubr.f32.gmra.mxu0 %v171
        %v640 = vpop.f32.mrf.mxu0
        %v641 = vadd.f32 %v571, %v640
        %v642 = vpop.f32.mrf.mxu0
        %643 = vdwg.mxu0
        %644 = vmatprep.subr.mxu0 0.0
        %645 = vmatpush1.xpose.msra.mxu0 0.0
        %646 = vmatprep.subr.mxu0 0.0
        %647 = vmatpush1.xpose.msra.mxu0 0.0
        %648 = vmatprep.subr.mxu0 0.0
        %649 = vmatpush1.xpose.msra.mxu0 0.0
        %650 = vmatprep.subr.mxu0 0.0
        %651 = vmatpush1.xpose.msra.mxu0 0.0
        %652 = vmatprep.subr.mxu0 0.0
        %653 = vmatpush1.xpose.msra.mxu0 0.0
        %654 = vmatprep.subr.mxu0 0.0
        %655 = vmatpush1.xpose.msra.mxu0 0.0
        %656 = vmatprep.subr.mxu0 0.0
        %657 = vmatpush1.xpose.msra.mxu0 0.0
        %658 = vmatprep.subr.mxu0 0.0
        %659 = vmatpush1.xpose.msra.mxu0 0.0
        %660 = vmatprep.subr.mxu0 0.0
        %661 = vmatpush1.xpose.msra.mxu0 0.0
        %662 = vmatprep.subr.mxu0 0.0
        %663 = vmatpush1.xpose.msra.mxu0 0.0
        %664 = vmatprep.subr.mxu0 0.0
        %665 = vmatpush1.xpose.msra.mxu0 0.0
        %666 = vmatprep.subr.mxu0 0.0
        %667 = vmatpush1.xpose.msra.mxu0 0.0
        %668 = vmatprep.subr.mxu0 0.0
        %669 = vmatpush1.xpose.msra.mxu0 0.0
        %670 = vmatprep.subr.mxu0 0.0
        %671 = vmatpush1.xpose.msra.mxu0 0.0
        %672 = vmatprep.subr.mxu0 0.0
        %673 = vmatpush1.xpose.msra.mxu0 0.0
        %674 = vmatprep.subr.mxu0 %v276
        %675 = vmatpush1.xpose.msra.mxu0 %v268
        %676 = vmatprep.subr.mxu0 0.0
        %677 = vmatpush2.xpose.msra.mxu0 0.0
        %678 = vmatprep.subr.mxu0 0.0
        %679 = vmatpush2.xpose.msra.mxu0 0.0
        %680 = vmatprep.subr.mxu0 0.0
        %681 = vmatpush2.xpose.msra.mxu0 0.0
        %682 = vmatprep.subr.mxu0 0.0
        %683 = vmatpush2.xpose.msra.mxu0 0.0
        %684 = vmatprep.subr.mxu0 0.0
        %685 = vmatpush2.xpose.msra.mxu0 0.0
        %686 = vmatprep.subr.mxu0 0.0
        %687 = vmatpush2.xpose.msra.mxu0 0.0
        %688 = vmatprep.subr.mxu0 0.0
        %689 = vmatpush2.xpose.msra.mxu0 0.0
        %690 = vmatprep.subr.mxu0 0.0
        %691 = vmatpush2.xpose.msra.mxu0 0.0
        %692 = vmatprep.subr.mxu0 0.0
        %693 = vmatpush2.xpose.msra.mxu0 0.0
        %694 = vmatprep.subr.mxu0 0.0
        %695 = vmatpush2.xpose.msra.mxu0 0.0
        %696 = vmatprep.subr.mxu0 0.0
        %697 = vmatpush2.xpose.msra.mxu0 0.0
        %698 = vmatprep.subr.mxu0 0.0
        %699 = vmatpush2.xpose.msra.mxu0 0.0
        %700 = vmatprep.subr.mxu0 0.0
        %701 = vmatpush2.xpose.msra.mxu0 0.0
        %702 = vmatprep.subr.mxu0 0.0
        %703 = vmatpush2.xpose.msra.mxu0 0.0
        %704 = vmatprep.subr.mxu0 0.0
        %705 = vmatpush2.xpose.msra.mxu0 0.0
        %706 = vmatprep.subr.mxu0 0.0
        %707 = vmatpush2.xpose.msra.mxu0 0.0
        %708 = vmatprep.mubr.f32.mxu0 %v174
        %709 = vmatmul.mubr.f32.gmra.mxu0 %v173
        %v710 = vpop.f32.mrf.mxu0
        %v711 = vadd.f32 %v641, %v710
        %v712 = vpop.f32.mrf.mxu0
        %713 = vdwg.mxu0
        %714 = vmatprep.subr.mxu0 0.0
        %715 = vmatpush1.xpose.msra.mxu0 0.0
        %716 = vmatprep.subr.mxu0 0.0
        %717 = vmatpush1.xpose.msra.mxu0 0.0
        %718 = vmatprep.subr.mxu0 0.0
        %719 = vmatpush1.xpose.msra.mxu0 0.0
        %720 = vmatprep.subr.mxu0 0.0
        %721 = vmatpush1.xpose.msra.mxu0 0.0
        %722 = vmatprep.subr.mxu0 0.0
        %723 = vmatpush1.xpose.msra.mxu0 0.0
        %724 = vmatprep.subr.mxu0 0.0
        %725 = vmatpush1.xpose.msra.mxu0 0.0
        %726 = vmatprep.subr.mxu0 0.0
        %727 = vmatpush1.xpose.msra.mxu0 0.0
        %728 = vmatprep.subr.mxu0 0.0
        %729 = vmatpush1.xpose.msra.mxu0 0.0
        %730 = vmatprep.subr.mxu0 0.0
        %731 = vmatpush1.xpose.msra.mxu0 0.0
        %732 = vmatprep.subr.mxu0 0.0
        %733 = vmatpush1.xpose.msra.mxu0 0.0
        %734 = vmatprep.subr.mxu0 0.0
        %735 = vmatpush1.xpose.msra.mxu0 0.0
        %736 = vmatprep.subr.mxu0 0.0
        %737 = vmatpush1.xpose.msra.mxu0 0.0
        %738 = vmatprep.subr.mxu0 0.0
        %739 = vmatpush1.xpose.msra.mxu0 0.0
        %740 = vmatprep.subr.mxu0 0.0
        %741 = vmatpush1.xpose.msra.mxu0 0.0
        %742 = vmatprep.subr.mxu0 0.0
        %743 = vmatpush1.xpose.msra.mxu0 0.0
        %744 = vmatprep.subr.mxu0 %v277
        %745 = vmatpush1.xpose.msra.mxu0 %v275
        %746 = vmatprep.subr.mxu0 0.0
        %747 = vmatpush2.xpose.msra.mxu0 0.0
        %748 = vmatprep.subr.mxu0 0.0
        %749 = vmatpush2.xpose.msra.mxu0 0.0
        %750 = vmatprep.subr.mxu0 0.0
        %751 = vmatpush2.xpose.msra.mxu0 0.0
        %752 = vmatprep.subr.mxu0 0.0
        %753 = vmatpush2.xpose.msra.mxu0 0.0
        %754 = vmatprep.subr.mxu0 0.0
        %755 = vmatpush2.xpose.msra.mxu0 0.0
        %756 = vmatprep.subr.mxu0 0.0
        %757 = vmatpush2.xpose.msra.mxu0 0.0
        %758 = vmatprep.subr.mxu0 0.0
        %759 = vmatpush2.xpose.msra.mxu0 0.0
        %760 = vmatprep.subr.mxu0 0.0
        %761 = vmatpush2.xpose.msra.mxu0 0.0
        %762 = vmatprep.subr.mxu0 0.0
        %763 = vmatpush2.xpose.msra.mxu0 0.0
        %764 = vmatprep.subr.mxu0 0.0
        %765 = vmatpush2.xpose.msra.mxu0 0.0
        %766 = vmatprep.subr.mxu0 0.0
        %767 = vmatpush2.xpose.msra.mxu0 0.0
        %768 = vmatprep.subr.mxu0 0.0
        %769 = vmatpush2.xpose.msra.mxu0 0.0
        %770 = vmatprep.subr.mxu0 0.0
        %771 = vmatpush2.xpose.msra.mxu0 0.0
        %772 = vmatprep.subr.mxu0 0.0
        %773 = vmatpush2.xpose.msra.mxu0 0.0
        %774 = vmatprep.subr.mxu0 0.0
        %775 = vmatpush2.xpose.msra.mxu0 0.0
        %776 = vmatprep.subr.mxu0 0.0
        %777 = vmatpush2.xpose.msra.mxu0 0.0
        %778 = vmatprep.mubr.f32.mxu0 %v176
        %779 = vmatmul.mubr.f32.gmra.mxu0 %v175
        %v780 = vpop.f32.mrf.mxu0
        %v781 = vadd.f32 %v711, %v780
        %v782 = vpop.f32.mrf.mxu0
        %783 = vdwg.mxu0
        %784 = vmatprep.subr.mxu0 0.0
        %785 = vmatpush1.xpose.msra.mxu0 0.0
        %786 = vmatprep.subr.mxu0 0.0
        %787 = vmatpush1.xpose.msra.mxu0 0.0
        %788 = vmatprep.subr.mxu0 0.0
        %789 = vmatpush1.xpose.msra.mxu0 0.0
        %790 = vmatprep.subr.mxu0 0.0
        %791 = vmatpush1.xpose.msra.mxu0 0.0
        %792 = vmatprep.subr.mxu0 0.0
        %793 = vmatpush1.xpose.msra.mxu0 0.0
        %794 = vmatprep.subr.mxu0 0.0
        %795 = vmatpush1.xpose.msra.mxu0 0.0
        %796 = vmatprep.subr.mxu0 0.0
        %797 = vmatpush1.xpose.msra.mxu0 0.0
        %798 = vmatprep.subr.mxu0 0.0
        %799 = vmatpush1.xpose.msra.mxu0 0.0
        %800 = vmatprep.subr.mxu0 0.0
        %801 = vmatpush1.xpose.msra.mxu0 0.0
        %802 = vmatprep.subr.mxu0 0.0
        %803 = vmatpush1.xpose.msra.mxu0 0.0
        %804 = vmatprep.subr.mxu0 0.0
        %805 = vmatpush1.xpose.msra.mxu0 0.0
        %806 = vmatprep.subr.mxu0 0.0
        %807 = vmatpush1.xpose.msra.mxu0 0.0
        %808 = vmatprep.subr.mxu0 0.0
        %809 = vmatpush1.xpose.msra.mxu0 0.0
        %810 = vmatprep.subr.mxu0 0.0
        %811 = vmatpush1.xpose.msra.mxu0 0.0
        %812 = vmatprep.subr.mxu0 0.0
        %813 = vmatpush1.xpose.msra.mxu0 0.0
        %814 = vmatprep.subr.mxu0 %v293
        %815 = vmatpush1.xpose.msra.mxu0 %v285
        %816 = vmatprep.subr.mxu0 0.0
        %817 = vmatpush2.xpose.msra.mxu0 0.0
        %818 = vmatprep.subr.mxu0 0.0
        %819 = vmatpush2.xpose.msra.mxu0 0.0
        %820 = vmatprep.subr.mxu0 0.0
        %821 = vmatpush2.xpose.msra.mxu0 0.0
        %822 = vmatprep.subr.mxu0 0.0
        %823 = vmatpush2.xpose.msra.mxu0 0.0
        %824 = vmatprep.subr.mxu0 0.0
        %825 = vmatpush2.xpose.msra.mxu0 0.0
        %826 = vmatprep.subr.mxu0 0.0
        %827 = vmatpush2.xpose.msra.mxu0 0.0
        %828 = vmatprep.subr.mxu0 0.0
        %829 = vmatpush2.xpose.msra.mxu0 0.0
        %830 = vmatprep.subr.mxu0 0.0
        %831 = vmatpush2.xpose.msra.mxu0 0.0
        %832 = vmatprep.subr.mxu0 0.0
        %833 = vmatpush2.xpose.msra.mxu0 0.0
        %834 = vmatprep.subr.mxu0 0.0
        %835 = vmatpush2.xpose.msra.mxu0 0.0
        %836 = vmatprep.subr.mxu0 0.0
        %837 = vmatpush2.xpose.msra.mxu0 0.0
        %838 = vmatprep.subr.mxu0 0.0
        %839 = vmatpush2.xpose.msra.mxu0 0.0
        %840 = vmatprep.subr.mxu0 0.0
        %841 = vmatpush2.xpose.msra.mxu0 0.0
        %842 = vmatprep.subr.mxu0 0.0
        %843 = vmatpush2.xpose.msra.mxu0 0.0
        %844 = vmatprep.subr.mxu0 0.0
        %845 = vmatpush2.xpose.msra.mxu0 0.0
        %846 = vmatprep.subr.mxu0 0.0
        %847 = vmatpush2.xpose.msra.mxu0 0.0
        %848 = vmatprep.mubr.f32.mxu0 %v178
        %849 = vmatmul.mubr.f32.gmra.mxu0 %v177
        %v850 = vpop.f32.mrf.mxu0
        %v851 = vadd.f32 %v781, %v850
        %v852 = vpop.f32.mrf.mxu0
        %853 = vdwg.mxu0
        %854 = vmatprep.subr.mxu0 0.0
        %855 = vmatpush1.xpose.msra.mxu0 0.0
        %856 = vmatprep.subr.mxu0 0.0
        %857 = vmatpush1.xpose.msra.mxu0 0.0
        %858 = vmatprep.subr.mxu0 0.0
        %859 = vmatpush1.xpose.msra.mxu0 0.0
        %860 = vmatprep.subr.mxu0 0.0
        %861 = vmatpush1.xpose.msra.mxu0 0.0
        %862 = vmatprep.subr.mxu0 0.0
        %863 = vmatpush1.xpose.msra.mxu0 0.0
        %864 = vmatprep.subr.mxu0 0.0
        %865 = vmatpush1.xpose.msra.mxu0 0.0
        %866 = vmatprep.subr.mxu0 0.0
        %867 = vmatpush1.xpose.msra.mxu0 0.0
        %868 = vmatprep.subr.mxu0 0.0
        %869 = vmatpush1.xpose.msra.mxu0 0.0
        %870 = vmatprep.subr.mxu0 0.0
        %871 = vmatpush1.xpose.msra.mxu0 0.0
        %872 = vmatprep.subr.mxu0 0.0
        %873 = vmatpush1.xpose.msra.mxu0 0.0
        %874 = vmatprep.subr.mxu0 0.0
        %875 = vmatpush1.xpose.msra.mxu0 0.0
        %876 = vmatprep.subr.mxu0 0.0
        %877 = vmatpush1.xpose.msra.mxu0 0.0
        %878 = vmatprep.subr.mxu0 0.0
        %879 = vmatpush1.xpose.msra.mxu0 0.0
        %880 = vmatprep.subr.mxu0 0.0
        %881 = vmatpush1.xpose.msra.mxu0 0.0
        %882 = vmatprep.subr.mxu0 0.0
        %883 = vmatpush1.xpose.msra.mxu0 0.0
        %884 = vmatprep.subr.mxu0 %v294
        %885 = vmatpush1.xpose.msra.mxu0 %v292
        %886 = vmatprep.subr.mxu0 0.0
        %887 = vmatpush2.xpose.msra.mxu0 0.0
        %888 = vmatprep.subr.mxu0 0.0
        %889 = vmatpush2.xpose.msra.mxu0 0.0
        %890 = vmatprep.subr.mxu0 0.0
        %891 = vmatpush2.xpose.msra.mxu0 0.0
        %892 = vmatprep.subr.mxu0 0.0
        %893 = vmatpush2.xpose.msra.mxu0 0.0
        %894 = vmatprep.subr.mxu0 0.0
        %895 = vmatpush2.xpose.msra.mxu0 0.0
        %896 = vmatprep.subr.mxu0 0.0
        %897 = vmatpush2.xpose.msra.mxu0 0.0
        %898 = vmatprep.subr.mxu0 0.0
        %899 = vmatpush2.xpose.msra.mxu0 0.0
        %900 = vmatprep.subr.mxu0 0.0
        %901 = vmatpush2.xpose.msra.mxu0 0.0
        %902 = vmatprep.subr.mxu0 0.0
        %903 = vmatpush2.xpose.msra.mxu0 0.0
        %904 = vmatprep.subr.mxu0 0.0
        %905 = vmatpush2.xpose.msra.mxu0 0.0
        %906 = vmatprep.subr.mxu0 0.0
        %907 = vmatpush2.xpose.msra.mxu0 0.0
        %908 = vmatprep.subr.mxu0 0.0
        %909 = vmatpush2.xpose.msra.mxu0 0.0
        %910 = vmatprep.subr.mxu0 0.0
        %911 = vmatpush2.xpose.msra.mxu0 0.0
        %912 = vmatprep.subr.mxu0 0.0
        %913 = vmatpush2.xpose.msra.mxu0 0.0
        %914 = vmatprep.subr.mxu0 0.0
        %915 = vmatpush2.xpose.msra.mxu0 0.0
        %916 = vmatprep.subr.mxu0 0.0
        %917 = vmatpush2.xpose.msra.mxu0 0.0
        %918 = vmatprep.mubr.f32.mxu0 %v180
        %919 = vmatmul.mubr.f32.gmra.mxu0 %v179
        %v920 = vpop.f32.mrf.mxu0
        %v921 = vadd.f32 %v851, %v920
        %v922 = vpop.f32.mrf.mxu0
        %923 = vdwg.mxu0
        %924 = vmatprep.subr.mxu0 0.0
        %925 = vmatpush1.xpose.msra.mxu0 0.0
        %926 = vmatprep.subr.mxu0 0.0
        %927 = vmatpush1.xpose.msra.mxu0 0.0
        %928 = vmatprep.subr.mxu0 0.0
        %929 = vmatpush1.xpose.msra.mxu0 0.0
        %930 = vmatprep.subr.mxu0 0.0
        %931 = vmatpush1.xpose.msra.mxu0 0.0
        %932 = vmatprep.subr.mxu0 0.0
        %933 = vmatpush1.xpose.msra.mxu0 0.0
        %934 = vmatprep.subr.mxu0 0.0
        %935 = vmatpush1.xpose.msra.mxu0 0.0
        %936 = vmatprep.subr.mxu0 0.0
        %937 = vmatpush1.xpose.msra.mxu0 0.0
        %938 = vmatprep.subr.mxu0 0.0
        %939 = vmatpush1.xpose.msra.mxu0 0.0
        %940 = vmatprep.subr.mxu0 0.0
        %941 = vmatpush1.xpose.msra.mxu0 0.0
        %942 = vmatprep.subr.mxu0 0.0
        %943 = vmatpush1.xpose.msra.mxu0 0.0
        %944 = vmatprep.subr.mxu0 0.0
        %945 = vmatpush1.xpose.msra.mxu0 0.0
        %946 = vmatprep.subr.mxu0 0.0
        %947 = vmatpush1.xpose.msra.mxu0 0.0
        %948 = vmatprep.subr.mxu0 0.0
        %949 = vmatpush1.xpose.msra.mxu0 0.0
        %950 = vmatprep.subr.mxu0 0.0
        %951 = vmatpush1.xpose.msra.mxu0 0.0
        %952 = vmatprep.subr.mxu0 0.0
        %953 = vmatpush1.xpose.msra.mxu0 0.0
        %954 = vmatprep.subr.mxu0 %v310
        %955 = vmatpush1.xpose.msra.mxu0 %v302
        %956 = vmatprep.subr.mxu0 0.0
        %957 = vmatpush2.xpose.msra.mxu0 0.0
        %958 = vmatprep.subr.mxu0 0.0
        %959 = vmatpush2.xpose.msra.mxu0 0.0
        %960 = vmatprep.subr.mxu0 0.0
        %961 = vmatpush2.xpose.msra.mxu0 0.0
        %962 = vmatprep.subr.mxu0 0.0
        %963 = vmatpush2.xpose.msra.mxu0 0.0
        %964 = vmatprep.subr.mxu0 0.0
        %965 = vmatpush2.xpose.msra.mxu0 0.0
        %966 = vmatprep.subr.mxu0 0.0
        %967 = vmatpush2.xpose.msra.mxu0 0.0
        %968 = vmatprep.subr.mxu0 0.0
        %969 = vmatpush2.xpose.msra.mxu0 0.0
        %970 = vmatprep.subr.mxu0 0.0
        %971 = vmatpush2.xpose.msra.mxu0 0.0
        %972 = vmatprep.subr.mxu0 0.0
        %973 = vmatpush2.xpose.msra.mxu0 0.0
        %974 = vmatprep.subr.mxu0 0.0
        %975 = vmatpush2.xpose.msra.mxu0 0.0
        %976 = vmatprep.subr.mxu0 0.0
        %977 = vmatpush2.xpose.msra.mxu0 0.0
        %978 = vmatprep.subr.mxu0 0.0
        %979 = vmatpush2.xpose.msra.mxu0 0.0
        %980 = vmatprep.subr.mxu0 0.0
        %981 = vmatpush2.xpose.msra.mxu0 0.0
        %982 = vmatprep.subr.mxu0 0.0
        %983 = vmatpush2.xpose.msra.mxu0 0.0
        %984 = vmatprep.subr.mxu0 0.0
        %985 = vmatpush2.xpose.msra.mxu0 0.0
        %986 = vmatprep.subr.mxu0 0.0
        %987 = vmatpush2.xpose.msra.mxu0 0.0
        %988 = vmatprep.mubr.f32.mxu0 %v182
        %989 = vmatmul.mubr.f32.gmra.mxu0 %v181
        %v990 = vpop.f32.mrf.mxu0
        %v991 = vadd.f32 %v921, %v990
        %v992 = vpop.f32.mrf.mxu0
        %993 = vdwg.mxu0
        %994 = vmatprep.subr.mxu0 0.0
        %995 = vmatpush1.xpose.msra.mxu0 0.0
        %996 = vmatprep.subr.mxu0 0.0
        %997 = vmatpush1.xpose.msra.mxu0 0.0
        %998 = vmatprep.subr.mxu0 0.0
        %999 = vmatpush1.xpose.msra.mxu0 0.0
        %1000 = vmatprep.subr.mxu0 0.0
        %1001 = vmatpush1.xpose.msra.mxu0 0.0
        %1002 = vmatprep.subr.mxu0 0.0
        %1003 = vmatpush1.xpose.msra.mxu0 0.0
        %1004 = vmatprep.subr.mxu0 0.0
        %1005 = vmatpush1.xpose.msra.mxu0 0.0
        %1006 = vmatprep.subr.mxu0 0.0
        %1007 = vmatpush1.xpose.msra.mxu0 0.0
        %1008 = vmatprep.subr.mxu0 0.0
        %1009 = vmatpush1.xpose.msra.mxu0 0.0
        %1010 = vmatprep.subr.mxu0 0.0
        %1011 = vmatpush1.xpose.msra.mxu0 0.0
        %1012 = vmatprep.subr.mxu0 0.0
        %1013 = vmatpush1.xpose.msra.mxu0 0.0
        %1014 = vmatprep.subr.mxu0 0.0
        %1015 = vmatpush1.xpose.msra.mxu0 0.0
        %1016 = vmatprep.subr.mxu0 0.0
        %1017 = vmatpush1.xpose.msra.mxu0 0.0
        %1018 = vmatprep.subr.mxu0 0.0
        %1019 = vmatpush1.xpose.msra.mxu0 0.0
        %1020 = vmatprep.subr.mxu0 0.0
        %1021 = vmatpush1.xpose.msra.mxu0 0.0
        %1022 = vmatprep.subr.mxu0 0.0
        %1023 = vmatpush1.xpose.msra.mxu0 0.0
        %1024 = vmatprep.subr.mxu0 %v311
        %1025 = vmatpush1.xpose.msra.mxu0 %v309
        %1026 = vmatprep.subr.mxu0 0.0
        %1027 = vmatpush2.xpose.msra.mxu0 0.0
        %1028 = vmatprep.subr.mxu0 0.0
        %1029 = vmatpush2.xpose.msra.mxu0 0.0
        %1030 = vmatprep.subr.mxu0 0.0
        %1031 = vmatpush2.xpose.msra.mxu0 0.0
        %1032 = vmatprep.subr.mxu0 0.0
        %1033 = vmatpush2.xpose.msra.mxu0 0.0
        %1034 = vmatprep.subr.mxu0 0.0
        %1035 = vmatpush2.xpose.msra.mxu0 0.0
        %1036 = vmatprep.subr.mxu0 0.0
        %1037 = vmatpush2.xpose.msra.mxu0 0.0
        %1038 = vmatprep.subr.mxu0 0.0
        %1039 = vmatpush2.xpose.msra.mxu0 0.0
        %1040 = vmatprep.subr.mxu0 0.0
        %1041 = vmatpush2.xpose.msra.mxu0 0.0
        %1042 = vmatprep.subr.mxu0 0.0
        %1043 = vmatpush2.xpose.msra.mxu0 0.0
        %1044 = vmatprep.subr.mxu0 0.0
        %1045 = vmatpush2.xpose.msra.mxu0 0.0
        %1046 = vmatprep.subr.mxu0 0.0
        %1047 = vmatpush2.xpose.msra.mxu0 0.0
        %1048 = vmatprep.subr.mxu0 0.0
        %1049 = vmatpush2.xpose.msra.mxu0 0.0
        %1050 = vmatprep.subr.mxu0 0.0
        %1051 = vmatpush2.xpose.msra.mxu0 0.0
        %1052 = vmatprep.subr.mxu0 0.0
        %1053 = vmatpush2.xpose.msra.mxu0 0.0
        %1054 = vmatprep.subr.mxu0 0.0
        %1055 = vmatpush2.xpose.msra.mxu0 0.0
        %1056 = vmatprep.subr.mxu0 0.0
        %1057 = vmatpush2.xpose.msra.mxu0 0.0
        %1058 = vmatprep.mubr.f32.mxu0 %v184
        %1059 = vmatmul.mubr.f32.gmra.mxu0 %v183
        %v1060 = vpop.f32.mrf.mxu0
        %v1061 = vadd.f32 %v991, %v1060
        %v1062 = vpop.f32.mrf.mxu0
        %1063 = vdwg.mxu0
        %1064 = vmatprep.subr.mxu0 0.0
        %1065 = vmatpush1.xpose.msra.mxu0 0.0
        %1066 = vmatprep.subr.mxu0 0.0
        %1067 = vmatpush1.xpose.msra.mxu0 0.0
        %1068 = vmatprep.subr.mxu0 0.0
        %1069 = vmatpush1.xpose.msra.mxu0 0.0
        %1070 = vmatprep.subr.mxu0 0.0
        %1071 = vmatpush1.xpose.msra.mxu0 0.0
        %1072 = vmatprep.subr.mxu0 0.0
        %1073 = vmatpush1.xpose.msra.mxu0 0.0
        %1074 = vmatprep.subr.mxu0 0.0
        %1075 = vmatpush1.xpose.msra.mxu0 0.0
        %1076 = vmatprep.subr.mxu0 0.0
        %1077 = vmatpush1.xpose.msra.mxu0 0.0
        %1078 = vmatprep.subr.mxu0 0.0
        %1079 = vmatpush1.xpose.msra.mxu0 0.0
        %1080 = vmatprep.subr.mxu0 0.0
        %1081 = vmatpush1.xpose.msra.mxu0 0.0
        %1082 = vmatprep.subr.mxu0 0.0
        %1083 = vmatpush1.xpose.msra.mxu0 0.0
        %1084 = vmatprep.subr.mxu0 0.0
        %1085 = vmatpush1.xpose.msra.mxu0 0.0
        %1086 = vmatprep.subr.mxu0 0.0
        %1087 = vmatpush1.xpose.msra.mxu0 0.0
        %1088 = vmatprep.subr.mxu0 0.0
        %1089 = vmatpush1.xpose.msra.mxu0 0.0
        %1090 = vmatprep.subr.mxu0 0.0
        %1091 = vmatpush1.xpose.msra.mxu0 0.0
        %1092 = vmatprep.subr.mxu0 0.0
        %1093 = vmatpush1.xpose.msra.mxu0 0.0
        %1094 = vmatprep.subr.mxu0 %v327
        %1095 = vmatpush1.xpose.msra.mxu0 %v319
        %1096 = vmatprep.subr.mxu0 0.0
        %1097 = vmatpush2.xpose.msra.mxu0 0.0
        %1098 = vmatprep.subr.mxu0 0.0
        %1099 = vmatpush2.xpose.msra.mxu0 0.0
        %1100 = vmatprep.subr.mxu0 0.0
        %1101 = vmatpush2.xpose.msra.mxu0 0.0
        %1102 = vmatprep.subr.mxu0 0.0
        %1103 = vmatpush2.xpose.msra.mxu0 0.0
        %1104 = vmatprep.subr.mxu0 0.0
        %1105 = vmatpush2.xpose.msra.mxu0 0.0
        %1106 = vmatprep.subr.mxu0 0.0
        %1107 = vmatpush2.xpose.msra.mxu0 0.0
        %1108 = vmatprep.subr.mxu0 0.0
        %1109 = vmatpush2.xpose.msra.mxu0 0.0
        %1110 = vmatprep.subr.mxu0 0.0
        %1111 = vmatpush2.xpose.msra.mxu0 0.0
        %1112 = vmatprep.subr.mxu0 0.0
        %1113 = vmatpush2.xpose.msra.mxu0 0.0
        %1114 = vmatprep.subr.mxu0 0.0
        %1115 = vmatpush2.xpose.msra.mxu0 0.0
        %1116 = vmatprep.subr.mxu0 0.0
        %1117 = vmatpush2.xpose.msra.mxu0 0.0
        %1118 = vmatprep.subr.mxu0 0.0
        %1119 = vmatpush2.xpose.msra.mxu0 0.0
        %1120 = vmatprep.subr.mxu0 0.0
        %1121 = vmatpush2.xpose.msra.mxu0 0.0
        %1122 = vmatprep.subr.mxu0 0.0
        %1123 = vmatpush2.xpose.msra.mxu0 0.0
        %1124 = vmatprep.subr.mxu0 0.0
        %1125 = vmatpush2.xpose.msra.mxu0 0.0
        %1126 = vmatprep.subr.mxu0 0.0
        %1127 = vmatpush2.xpose.msra.mxu0 0.0
        %1128 = vmatprep.mubr.f32.mxu0 %v186
        %1129 = vmatmul.mubr.f32.gmra.mxu0 %v185
        %v1130 = vpop.f32.mrf.mxu0
        %v1131 = vadd.f32 %v1061, %v1130
        %v1132 = vpop.f32.mrf.mxu0
        %1133 = vdwg.mxu0
        %1134 = vmatprep.subr.mxu0 0.0
        %1135 = vmatpush1.xpose.msra.mxu0 0.0
        %1136 = vmatprep.subr.mxu0 0.0
        %1137 = vmatpush1.xpose.msra.mxu0 0.0
        %1138 = vmatprep.subr.mxu0 0.0
        %1139 = vmatpush1.xpose.msra.mxu0 0.0
        %1140 = vmatprep.subr.mxu0 0.0
        %1141 = vmatpush1.xpose.msra.mxu0 0.0
        %1142 = vmatprep.subr.mxu0 0.0
        %1143 = vmatpush1.xpose.msra.mxu0 0.0
        %1144 = vmatprep.subr.mxu0 0.0
        %1145 = vmatpush1.xpose.msra.mxu0 0.0
        %1146 = vmatprep.subr.mxu0 0.0
        %1147 = vmatpush1.xpose.msra.mxu0 0.0
        %1148 = vmatprep.subr.mxu0 0.0
        %1149 = vmatpush1.xpose.msra.mxu0 0.0
        %1150 = vmatprep.subr.mxu0 0.0
        %1151 = vmatpush1.xpose.msra.mxu0 0.0
        %1152 = vmatprep.subr.mxu0 0.0
        %1153 = vmatpush1.xpose.msra.mxu0 0.0
        %1154 = vmatprep.subr.mxu0 0.0
        %1155 = vmatpush1.xpose.msra.mxu0 0.0
        %1156 = vmatprep.subr.mxu0 0.0
        %1157 = vmatpush1.xpose.msra.mxu0 0.0
        %1158 = vmatprep.subr.mxu0 0.0
        %1159 = vmatpush1.xpose.msra.mxu0 0.0
        %1160 = vmatprep.subr.mxu0 0.0
        %1161 = vmatpush1.xpose.msra.mxu0 0.0
        %1162 = vmatprep.subr.mxu0 0.0
        %1163 = vmatpush1.xpose.msra.mxu0 0.0
        %1164 = vmatprep.subr.mxu0 %v328
        %1165 = vmatpush1.xpose.msra.mxu0 %v326
        %1166 = vmatprep.subr.mxu0 0.0
        %1167 = vmatpush2.xpose.msra.mxu0 0.0
        %1168 = vmatprep.subr.mxu0 0.0
        %1169 = vmatpush2.xpose.msra.mxu0 0.0
        %1170 = vmatprep.subr.mxu0 0.0
        %1171 = vmatpush2.xpose.msra.mxu0 0.0
        %1172 = vmatprep.subr.mxu0 0.0
        %1173 = vmatpush2.xpose.msra.mxu0 0.0
        %1174 = vmatprep.subr.mxu0 0.0
        %1175 = vmatpush2.xpose.msra.mxu0 0.0
        %1176 = vmatprep.subr.mxu0 0.0
        %1177 = vmatpush2.xpose.msra.mxu0 0.0
        %1178 = vmatprep.subr.mxu0 0.0
        %1179 = vmatpush2.xpose.msra.mxu0 0.0
        %1180 = vmatprep.subr.mxu0 0.0
        %1181 = vmatpush2.xpose.msra.mxu0 0.0
        %1182 = vmatprep.subr.mxu0 0.0
        %1183 = vmatpush2.xpose.msra.mxu0 0.0
        %1184 = vmatprep.subr.mxu0 0.0
        %1185 = vmatpush2.xpose.msra.mxu0 0.0
        %1186 = vmatprep.subr.mxu0 0.0
        %1187 = vmatpush2.xpose.msra.mxu0 0.0
        %1188 = vmatprep.subr.mxu0 0.0
        %1189 = vmatpush2.xpose.msra.mxu0 0.0
        %1190 = vmatprep.subr.mxu0 0.0
        %1191 = vmatpush2.xpose.msra.mxu0 0.0
        %1192 = vmatprep.subr.mxu0 0.0
        %1193 = vmatpush2.xpose.msra.mxu0 0.0
        %1194 = vmatprep.subr.mxu0 0.0
        %1195 = vmatpush2.xpose.msra.mxu0 0.0
        %1196 = vmatprep.subr.mxu0 0.0
        %1197 = vmatpush2.xpose.msra.mxu0 0.0
        %1198 = vmatprep.mubr.f32.mxu0 %v188
        %1199 = vmatmul.mubr.f32.gmra.mxu0 %v187
        %v1200 = vpop.f32.mrf.mxu0
        %v1201 = vadd.f32 %v1131, %v1200
        %v1202 = vpop.f32.mrf.mxu0
        %1203 = vdwg.mxu0
        %1204 = vmatprep.subr.mxu0 0.0
        %1205 = vmatpush1.xpose.msra.mxu0 0.0
        %1206 = vmatprep.subr.mxu0 0.0
        %1207 = vmatpush1.xpose.msra.mxu0 0.0
        %1208 = vmatprep.subr.mxu0 0.0
        %1209 = vmatpush1.xpose.msra.mxu0 0.0
        %1210 = vmatprep.subr.mxu0 0.0
        %1211 = vmatpush1.xpose.msra.mxu0 0.0
        %1212 = vmatprep.subr.mxu0 0.0
        %1213 = vmatpush1.xpose.msra.mxu0 0.0
        %1214 = vmatprep.subr.mxu0 0.0
        %1215 = vmatpush1.xpose.msra.mxu0 0.0
        %1216 = vmatprep.subr.mxu0 0.0
        %1217 = vmatpush1.xpose.msra.mxu0 0.0
        %1218 = vmatprep.subr.mxu0 0.0
        %1219 = vmatpush1.xpose.msra.mxu0 0.0
        %1220 = vmatprep.subr.mxu0 0.0
        %1221 = vmatpush1.xpose.msra.mxu0 0.0
        %1222 = vmatprep.subr.mxu0 0.0
        %1223 = vmatpush1.xpose.msra.mxu0 0.0
        %1224 = vmatprep.subr.mxu0 0.0
        %1225 = vmatpush1.xpose.msra.mxu0 0.0
        %1226 = vmatprep.subr.mxu0 0.0
        %1227 = vmatpush1.xpose.msra.mxu0 0.0
        %1228 = vmatprep.subr.mxu0 0.0
        %1229 = vmatpush1.xpose.msra.mxu0 0.0
        %1230 = vmatprep.subr.mxu0 0.0
        %1231 = vmatpush1.xpose.msra.mxu0 0.0
        %1232 = vmatprep.subr.mxu0 0.0
        %1233 = vmatpush1.xpose.msra.mxu0 0.0
        %1234 = vmatprep.subr.mxu0 %v344
        %1235 = vmatpush1.xpose.msra.mxu0 %v336
        %1236 = vmatprep.subr.mxu0 0.0
        %1237 = vmatpush2.xpose.msra.mxu0 0.0
        %1238 = vmatprep.subr.mxu0 0.0
        %1239 = vmatpush2.xpose.msra.mxu0 0.0
        %1240 = vmatprep.subr.mxu0 0.0
        %1241 = vmatpush2.xpose.msra.mxu0 0.0
        %1242 = vmatprep.subr.mxu0 0.0
        %1243 = vmatpush2.xpose.msra.mxu0 0.0
        %1244 = vmatprep.subr.mxu0 0.0
        %1245 = vmatpush2.xpose.msra.mxu0 0.0
        %1246 = vmatprep.subr.mxu0 0.0
        %1247 = vmatpush2.xpose.msra.mxu0 0.0
        %1248 = vmatprep.subr.mxu0 0.0
        %1249 = vmatpush2.xpose.msra.mxu0 0.0
        %1250 = vmatprep.subr.mxu0 0.0
        %1251 = vmatpush2.xpose.msra.mxu0 0.0
        %1252 = vmatprep.subr.mxu0 0.0
        %1253 = vmatpush2.xpose.msra.mxu0 0.0
        %1254 = vmatprep.subr.mxu0 0.0
        %1255 = vmatpush2.xpose.msra.mxu0 0.0
        %1256 = vmatprep.subr.mxu0 0.0
        %1257 = vmatpush2.xpose.msra.mxu0 0.0
        %1258 = vmatprep.subr.mxu0 0.0
        %1259 = vmatpush2.xpose.msra.mxu0 0.0
        %1260 = vmatprep.subr.mxu0 0.0
        %1261 = vmatpush2.xpose.msra.mxu0 0.0
        %1262 = vmatprep.subr.mxu0 0.0
        %1263 = vmatpush2.xpose.msra.mxu0 0.0
        %1264 = vmatprep.subr.mxu0 0.0
        %1265 = vmatpush2.xpose.msra.mxu0 0.0
        %1266 = vmatprep.subr.mxu0 0.0
        %1267 = vmatpush2.xpose.msra.mxu0 0.0
        %1268 = vmatprep.mubr.f32.mxu0 %v190
        %1269 = vmatmul.mubr.f32.gmra.mxu0 %v189
        %v1270 = vpop.f32.mrf.mxu0
        %v1271 = vadd.f32 %v1201, %v1270
        %v1272 = vpop.f32.mrf.mxu0
        %1273 = vdwg.mxu0
        %1274 = vmatprep.subr.mxu0 0.0
        %1275 = vmatpush1.xpose.msra.mxu0 0.0
        %1276 = vmatprep.subr.mxu0 0.0
        %1277 = vmatpush1.xpose.msra.mxu0 0.0
        %1278 = vmatprep.subr.mxu0 0.0
        %1279 = vmatpush1.xpose.msra.mxu0 0.0
        %1280 = vmatprep.subr.mxu0 0.0
        %1281 = vmatpush1.xpose.msra.mxu0 0.0
        %1282 = vmatprep.subr.mxu0 0.0
        %1283 = vmatpush1.xpose.msra.mxu0 0.0
        %1284 = vmatprep.subr.mxu0 0.0
        %1285 = vmatpush1.xpose.msra.mxu0 0.0
        %1286 = vmatprep.subr.mxu0 0.0
        %1287 = vmatpush1.xpose.msra.mxu0 0.0
        %1288 = vmatprep.subr.mxu0 0.0
        %1289 = vmatpush1.xpose.msra.mxu0 0.0
        %1290 = vmatprep.subr.mxu0 0.0
        %1291 = vmatpush1.xpose.msra.mxu0 0.0
        %1292 = vmatprep.subr.mxu0 0.0
        %1293 = vmatpush1.xpose.msra.mxu0 0.0
        %1294 = vmatprep.subr.mxu0 0.0
        %1295 = vmatpush1.xpose.msra.mxu0 0.0
        %1296 = vmatprep.subr.mxu0 0.0
        %1297 = vmatpush1.xpose.msra.mxu0 0.0
        %1298 = vmatprep.subr.mxu0 0.0
        %1299 = vmatpush1.xpose.msra.mxu0 0.0
        %1300 = vmatprep.subr.mxu0 0.0
        %1301 = vmatpush1.xpose.msra.mxu0 0.0
        %1302 = vmatprep.subr.mxu0 0.0
        %1303 = vmatpush1.xpose.msra.mxu0 0.0
        %1304 = vmatprep.subr.mxu0 %v345
        %1305 = vmatpush1.xpose.msra.mxu0 %v343
        %1306 = vmatprep.subr.mxu0 0.0
        %1307 = vmatpush2.xpose.msra.mxu0 0.0
        %1308 = vmatprep.subr.mxu0 0.0
        %1309 = vmatpush2.xpose.msra.mxu0 0.0
        %1310 = vmatprep.subr.mxu0 0.0
        %1311 = vmatpush2.xpose.msra.mxu0 0.0
        %1312 = vmatprep.subr.mxu0 0.0
        %1313 = vmatpush2.xpose.msra.mxu0 0.0
        %1314 = vmatprep.subr.mxu0 0.0
        %1315 = vmatpush2.xpose.msra.mxu0 0.0
        %1316 = vmatprep.subr.mxu0 0.0
        %1317 = vmatpush2.xpose.msra.mxu0 0.0
        %1318 = vmatprep.subr.mxu0 0.0
        %1319 = vmatpush2.xpose.msra.mxu0 0.0
        %1320 = vmatprep.subr.mxu0 0.0
        %1321 = vmatpush2.xpose.msra.mxu0 0.0
        %1322 = vmatprep.subr.mxu0 0.0
        %1323 = vmatpush2.xpose.msra.mxu0 0.0
        %1324 = vmatprep.subr.mxu0 0.0
        %1325 = vmatpush2.xpose.msra.mxu0 0.0
        %1326 = vmatprep.subr.mxu0 0.0
        %1327 = vmatpush2.xpose.msra.mxu0 0.0
        %1328 = vmatprep.subr.mxu0 0.0
        %1329 = vmatpush2.xpose.msra.mxu0 0.0
        %1330 = vmatprep.subr.mxu0 0.0
        %1331 = vmatpush2.xpose.msra.mxu0 0.0
        %1332 = vmatprep.subr.mxu0 0.0
        %1333 = vmatpush2.xpose.msra.mxu0 0.0
        %1334 = vmatprep.subr.mxu0 0.0
        %1335 = vmatpush2.xpose.msra.mxu0 0.0
        %1336 = vmatprep.subr.mxu0 0.0
        %1337 = vmatpush2.xpose.msra.mxu0 0.0
        %1338 = vmatprep.mubr.f32.mxu0 %v192
        %1339 = vmatmul.mubr.f32.gmra.mxu0 %v191
        %v1340 = vpop.f32.mrf.mxu0
        %v1341 = vadd.f32 %v1271, %v1340
        %v1342 = vpop.f32.mrf.mxu0
        %1343 = vdwg.mxu0
        %1344 = vmatprep.subr.mxu0 0.0
        %1345 = vmatpush1.xpose.msra.mxu0 0.0
        %1346 = vmatprep.subr.mxu0 0.0
        %1347 = vmatpush1.xpose.msra.mxu0 0.0
        %1348 = vmatprep.subr.mxu0 0.0
        %1349 = vmatpush1.xpose.msra.mxu0 0.0
        %1350 = vmatprep.subr.mxu0 0.0
        %1351 = vmatpush1.xpose.msra.mxu0 0.0
        %1352 = vmatprep.subr.mxu0 0.0
        %1353 = vmatpush1.xpose.msra.mxu0 0.0
        %1354 = vmatprep.subr.mxu0 0.0
        %1355 = vmatpush1.xpose.msra.mxu0 0.0
        %1356 = vmatprep.subr.mxu0 0.0
        %1357 = vmatpush1.xpose.msra.mxu0 0.0
        %1358 = vmatprep.subr.mxu0 0.0
        %1359 = vmatpush1.xpose.msra.mxu0 0.0
        %1360 = vmatprep.subr.mxu0 0.0
        %1361 = vmatpush1.xpose.msra.mxu0 0.0
        %1362 = vmatprep.subr.mxu0 0.0
        %1363 = vmatpush1.xpose.msra.mxu0 0.0
        %1364 = vmatprep.subr.mxu0 0.0
        %1365 = vmatpush1.xpose.msra.mxu0 0.0
        %1366 = vmatprep.subr.mxu0 0.0
        %1367 = vmatpush1.xpose.msra.mxu0 0.0
        %1368 = vmatprep.subr.mxu0 0.0
        %1369 = vmatpush1.xpose.msra.mxu0 0.0
        %1370 = vmatprep.subr.mxu0 0.0
        %1371 = vmatpush1.xpose.msra.mxu0 0.0
        %1372 = vmatprep.subr.mxu0 0.0
        %1373 = vmatpush1.xpose.msra.mxu0 0.0
        %1374 = vmatprep.subr.mxu0 %v361
        %1375 = vmatpush1.xpose.msra.mxu0 %v353
        %1376 = vmatprep.subr.mxu0 0.0
        %1377 = vmatpush2.xpose.msra.mxu0 0.0
        %1378 = vmatprep.subr.mxu0 0.0
        %1379 = vmatpush2.xpose.msra.mxu0 0.0
        %1380 = vmatprep.subr.mxu0 0.0
        %1381 = vmatpush2.xpose.msra.mxu0 0.0
        %1382 = vmatprep.subr.mxu0 0.0
        %1383 = vmatpush2.xpose.msra.mxu0 0.0
        %1384 = vmatprep.subr.mxu0 0.0
        %1385 = vmatpush2.xpose.msra.mxu0 0.0
        %1386 = vmatprep.subr.mxu0 0.0
        %1387 = vmatpush2.xpose.msra.mxu0 0.0
        %1388 = vmatprep.subr.mxu0 0.0
        %1389 = vmatpush2.xpose.msra.mxu0 0.0
        %1390 = vmatprep.subr.mxu0 0.0
        %1391 = vmatpush2.xpose.msra.mxu0 0.0
        %1392 = vmatprep.subr.mxu0 0.0
        %1393 = vmatpush2.xpose.msra.mxu0 0.0
        %1394 = vmatprep.subr.mxu0 0.0
        %1395 = vmatpush2.xpose.msra.mxu0 0.0
        %1396 = vmatprep.subr.mxu0 0.0
        %1397 = vmatpush2.xpose.msra.mxu0 0.0
        %1398 = vmatprep.subr.mxu0 0.0
        %1399 = vmatpush2.xpose.msra.mxu0 0.0
        %1400 = vmatprep.subr.mxu0 0.0
        %1401 = vmatpush2.xpose.msra.mxu0 0.0
        %1402 = vmatprep.subr.mxu0 0.0
        %1403 = vmatpush2.xpose.msra.mxu0 0.0
        %1404 = vmatprep.subr.mxu0 0.0
        %1405 = vmatpush2.xpose.msra.mxu0 0.0
        %1406 = vmatprep.subr.mxu0 0.0
        %1407 = vmatpush2.xpose.msra.mxu0 0.0
        %1408 = vmatprep.mubr.f32.mxu0 %v194
        %1409 = vmatmul.mubr.f32.gmra.mxu0 %v193
        %v1410 = vpop.f32.mrf.mxu0
        %v1411 = vadd.f32 %v1341, %v1410
        %v1412 = vpop.f32.mrf.mxu0
        %1413 = vdwg.mxu0
        %1414 = vmatprep.subr.mxu0 0.0
        %1415 = vmatpush1.xpose.msra.mxu0 0.0
        %1416 = vmatprep.subr.mxu0 0.0
        %1417 = vmatpush1.xpose.msra.mxu0 0.0
        %1418 = vmatprep.subr.mxu0 0.0
        %1419 = vmatpush1.xpose.msra.mxu0 0.0
        %1420 = vmatprep.subr.mxu0 0.0
        %1421 = vmatpush1.xpose.msra.mxu0 0.0
        %1422 = vmatprep.subr.mxu0 0.0
        %1423 = vmatpush1.xpose.msra.mxu0 0.0
        %1424 = vmatprep.subr.mxu0 0.0
        %1425 = vmatpush1.xpose.msra.mxu0 0.0
        %1426 = vmatprep.subr.mxu0 0.0
        %1427 = vmatpush1.xpose.msra.mxu0 0.0
        %1428 = vmatprep.subr.mxu0 0.0
        %1429 = vmatpush1.xpose.msra.mxu0 0.0
        %1430 = vmatprep.subr.mxu0 0.0
        %1431 = vmatpush1.xpose.msra.mxu0 0.0
        %1432 = vmatprep.subr.mxu0 0.0
        %1433 = vmatpush1.xpose.msra.mxu0 0.0
        %1434 = vmatprep.subr.mxu0 0.0
        %1435 = vmatpush1.xpose.msra.mxu0 0.0
        %1436 = vmatprep.subr.mxu0 0.0
        %1437 = vmatpush1.xpose.msra.mxu0 0.0
        %1438 = vmatprep.subr.mxu0 0.0
        %1439 = vmatpush1.xpose.msra.mxu0 0.0
        %1440 = vmatprep.subr.mxu0 0.0
        %1441 = vmatpush1.xpose.msra.mxu0 0.0
        %1442 = vmatprep.subr.mxu0 0.0
        %1443 = vmatpush1.xpose.msra.mxu0 0.0
        %1444 = vmatprep.subr.mxu0 %v362
        %1445 = vmatpush1.xpose.msra.mxu0 %v360
        %1446 = vmatprep.subr.mxu0 0.0
        %1447 = vmatpush2.xpose.msra.mxu0 0.0
        %1448 = vmatprep.subr.mxu0 0.0
        %1449 = vmatpush2.xpose.msra.mxu0 0.0
        %1450 = vmatprep.subr.mxu0 0.0
        %1451 = vmatpush2.xpose.msra.mxu0 0.0
        %1452 = vmatprep.subr.mxu0 0.0
        %1453 = vmatpush2.xpose.msra.mxu0 0.0
        %1454 = vmatprep.subr.mxu0 0.0
        %1455 = vmatpush2.xpose.msra.mxu0 0.0
        %1456 = vmatprep.subr.mxu0 0.0
        %1457 = vmatpush2.xpose.msra.mxu0 0.0
        %1458 = vmatprep.subr.mxu0 0.0
        %1459 = vmatpush2.xpose.msra.mxu0 0.0
        %1460 = vmatprep.subr.mxu0 0.0
        %1461 = vmatpush2.xpose.msra.mxu0 0.0
        %1462 = vmatprep.subr.mxu0 0.0
        %1463 = vmatpush2.xpose.msra.mxu0 0.0
        %1464 = vmatprep.subr.mxu0 0.0
        %1465 = vmatpush2.xpose.msra.mxu0 0.0
        %1466 = vmatprep.subr.mxu0 0.0
        %1467 = vmatpush2.xpose.msra.mxu0 0.0
        %1468 = vmatprep.subr.mxu0 0.0
        %1469 = vmatpush2.xpose.msra.mxu0 0.0
        %1470 = vmatprep.subr.mxu0 0.0
        %1471 = vmatpush2.xpose.msra.mxu0 0.0
        %1472 = vmatprep.subr.mxu0 0.0
        %1473 = vmatpush2.xpose.msra.mxu0 0.0
        %1474 = vmatprep.subr.mxu0 0.0
        %1475 = vmatpush2.xpose.msra.mxu0 0.0
        %1476 = vmatprep.subr.mxu0 0.0
        %1477 = vmatpush2.xpose.msra.mxu0 0.0
        %1478 = vmatprep.mubr.f32.mxu0 %v196
        %1479 = vmatmul.mubr.f32.gmra.mxu0 %v195
        %v1480 = vpop.f32.mrf.mxu0
        %v1481 = vadd.f32 %v1411, %v1480
        %v1482 = vpop.f32.mrf.mxu0
        %1483 = vdwg.mxu0
        %1484 = vmatprep.subr.mxu0 0.0
        %1485 = vmatpush1.xpose.msra.mxu0 0.0
        %1486 = vmatprep.subr.mxu0 0.0
        %1487 = vmatpush1.xpose.msra.mxu0 0.0
        %1488 = vmatprep.subr.mxu0 0.0
        %1489 = vmatpush1.xpose.msra.mxu0 0.0
        %1490 = vmatprep.subr.mxu0 0.0
        %1491 = vmatpush1.xpose.msra.mxu0 0.0
        %1492 = vmatprep.subr.mxu0 0.0
        %1493 = vmatpush1.xpose.msra.mxu0 0.0
        %1494 = vmatprep.subr.mxu0 0.0
        %1495 = vmatpush1.xpose.msra.mxu0 0.0
        %1496 = vmatprep.subr.mxu0 0.0
        %1497 = vmatpush1.xpose.msra.mxu0 0.0
        %1498 = vmatprep.subr.mxu0 0.0
        %1499 = vmatpush1.xpose.msra.mxu0 0.0
        %1500 = vmatprep.subr.mxu0 0.0
        %1501 = vmatpush1.xpose.msra.mxu0 0.0
        %1502 = vmatprep.subr.mxu0 0.0
        %1503 = vmatpush1.xpose.msra.mxu0 0.0
        %1504 = vmatprep.subr.mxu0 0.0
        %1505 = vmatpush1.xpose.msra.mxu0 0.0
        %1506 = vmatprep.subr.mxu0 0.0
        %1507 = vmatpush1.xpose.msra.mxu0 0.0
        %1508 = vmatprep.subr.mxu0 0.0
        %1509 = vmatpush1.xpose.msra.mxu0 0.0
        %1510 = vmatprep.subr.mxu0 0.0
        %1511 = vmatpush1.xpose.msra.mxu0 0.0
        %1512 = vmatprep.subr.mxu0 0.0
        %1513 = vmatpush1.xpose.msra.mxu0 0.0
        %1514 = vmatprep.subr.mxu0 %v378
        %1515 = vmatpush1.xpose.msra.mxu0 %v370
        %1516 = vmatprep.subr.mxu0 0.0
        %1517 = vmatpush2.xpose.msra.mxu0 0.0
        %1518 = vmatprep.subr.mxu0 0.0
        %1519 = vmatpush2.xpose.msra.mxu0 0.0
        %1520 = vmatprep.subr.mxu0 0.0
        %1521 = vmatpush2.xpose.msra.mxu0 0.0
        %1522 = vmatprep.subr.mxu0 0.0
        %1523 = vmatpush2.xpose.msra.mxu0 0.0
        %1524 = vmatprep.subr.mxu0 0.0
        %1525 = vmatpush2.xpose.msra.mxu0 0.0
        %1526 = vmatprep.subr.mxu0 0.0
        %1527 = vmatpush2.xpose.msra.mxu0 0.0
        %1528 = vmatprep.subr.mxu0 0.0
        %1529 = vmatpush2.xpose.msra.mxu0 0.0
        %1530 = vmatprep.subr.mxu0 0.0
        %1531 = vmatpush2.xpose.msra.mxu0 0.0
        %1532 = vmatprep.subr.mxu0 0.0
        %1533 = vmatpush2.xpose.msra.mxu0 0.0
        %1534 = vmatprep.subr.mxu0 0.0
        %1535 = vmatpush2.xpose.msra.mxu0 0.0
        %1536 = vmatprep.subr.mxu0 0.0
        %1537 = vmatpush2.xpose.msra.mxu0 0.0
        %1538 = vmatprep.subr.mxu0 0.0
        %1539 = vmatpush2.xpose.msra.mxu0 0.0
        %1540 = vmatprep.subr.mxu0 0.0
        %1541 = vmatpush2.xpose.msra.mxu0 0.0
        %1542 = vmatprep.subr.mxu0 0.0
        %1543 = vmatpush2.xpose.msra.mxu0 0.0
        %1544 = vmatprep.subr.mxu0 0.0
        %1545 = vmatpush2.xpose.msra.mxu0 0.0
        %1546 = vmatprep.subr.mxu0 0.0
        %1547 = vmatpush2.xpose.msra.mxu0 0.0
        %1548 = vmatprep.mubr.f32.mxu0 %v198
        %1549 = vmatmul.mubr.f32.gmra.mxu0 %v197
        %v1550 = vpop.f32.mrf.mxu0
        %v1551 = vadd.f32 %v1481, %v1550
        %v1552 = vpop.f32.mrf.mxu0
        %1553 = vdwg.mxu0
        %1554 = vmatprep.subr.mxu0 0.0
        %1555 = vmatpush1.xpose.msra.mxu0 0.0
        %1556 = vmatprep.subr.mxu0 0.0
        %1557 = vmatpush1.xpose.msra.mxu0 0.0
        %1558 = vmatprep.subr.mxu0 0.0
        %1559 = vmatpush1.xpose.msra.mxu0 0.0
        %1560 = vmatprep.subr.mxu0 0.0
        %1561 = vmatpush1.xpose.msra.mxu0 0.0
        %1562 = vmatprep.subr.mxu0 0.0
        %1563 = vmatpush1.xpose.msra.mxu0 0.0
        %1564 = vmatprep.subr.mxu0 0.0
        %1565 = vmatpush1.xpose.msra.mxu0 0.0
        %1566 = vmatprep.subr.mxu0 0.0
        %1567 = vmatpush1.xpose.msra.mxu0 0.0
        %1568 = vmatprep.subr.mxu0 0.0
        %1569 = vmatpush1.xpose.msra.mxu0 0.0
        %1570 = vmatprep.subr.mxu0 0.0
        %1571 = vmatpush1.xpose.msra.mxu0 0.0
        %1572 = vmatprep.subr.mxu0 0.0
        %1573 = vmatpush1.xpose.msra.mxu0 0.0
        %1574 = vmatprep.subr.mxu0 0.0
        %1575 = vmatpush1.xpose.msra.mxu0 0.0
        %1576 = vmatprep.subr.mxu0 0.0
        %1577 = vmatpush1.xpose.msra.mxu0 0.0
        %1578 = vmatprep.subr.mxu0 0.0
        %1579 = vmatpush1.xpose.msra.mxu0 0.0
        %1580 = vmatprep.subr.mxu0 0.0
        %1581 = vmatpush1.xpose.msra.mxu0 0.0
        %1582 = vmatprep.subr.mxu0 0.0
        %1583 = vmatpush1.xpose.msra.mxu0 0.0
        %1584 = vmatprep.subr.mxu0 %v379
        %1585 = vmatpush1.xpose.msra.mxu0 %v377
        %1586 = vmatprep.subr.mxu0 0.0
        %1587 = vmatpush2.xpose.msra.mxu0 0.0
        %1588 = vmatprep.subr.mxu0 0.0
        %1589 = vmatpush2.xpose.msra.mxu0 0.0
        %1590 = vmatprep.subr.mxu0 0.0
        %1591 = vmatpush2.xpose.msra.mxu0 0.0
        %1592 = vmatprep.subr.mxu0 0.0
        %1593 = vmatpush2.xpose.msra.mxu0 0.0
        %1594 = vmatprep.subr.mxu0 0.0
        %1595 = vmatpush2.xpose.msra.mxu0 0.0
        %1596 = vmatprep.subr.mxu0 0.0
        %1597 = vmatpush2.xpose.msra.mxu0 0.0
        %1598 = vmatprep.subr.mxu0 0.0
        %1599 = vmatpush2.xpose.msra.mxu0 0.0
        %1600 = vmatprep.subr.mxu0 0.0
        %1601 = vmatpush2.xpose.msra.mxu0 0.0
        %1602 = vmatprep.subr.mxu0 0.0
        %1603 = vmatpush2.xpose.msra.mxu0 0.0
        %1604 = vmatprep.subr.mxu0 0.0
        %1605 = vmatpush2.xpose.msra.mxu0 0.0
        %1606 = vmatprep.subr.mxu0 0.0
        %1607 = vmatpush2.xpose.msra.mxu0 0.0
        %1608 = vmatprep.subr.mxu0 0.0
        %1609 = vmatpush2.xpose.msra.mxu0 0.0
        %1610 = vmatprep.subr.mxu0 0.0
        %1611 = vmatpush2.xpose.msra.mxu0 0.0
        %1612 = vmatprep.subr.mxu0 0.0
        %1613 = vmatpush2.xpose.msra.mxu0 0.0
        %1614 = vmatprep.subr.mxu0 0.0
        %1615 = vmatpush2.xpose.msra.mxu0 0.0
        %1616 = vmatprep.subr.mxu0 0.0
        %1617 = vmatpush2.xpose.msra.mxu0 0.0
        %1618 = vmatprep.mubr.f32.mxu0 %v200
        %1619 = vmatmul.mubr.f32.gmra.mxu0 %v199
        %v1620 = vpop.f32.mrf.mxu0
        %v1621 = vadd.f32 %v1551, %v1620
        %v1622 = vpop.f32.mrf.mxu0
        %1623 = vdwg.mxu0
        %1624 = vmatprep.subr.mxu0 0.0
        %1625 = vmatpush1.xpose.msra.mxu0 0.0
        %1626 = vmatprep.subr.mxu0 0.0
        %1627 = vmatpush1.xpose.msra.mxu0 0.0
        %1628 = vmatprep.subr.mxu0 0.0
        %1629 = vmatpush1.xpose.msra.mxu0 0.0
        %1630 = vmatprep.subr.mxu0 0.0
        %1631 = vmatpush1.xpose.msra.mxu0 0.0
        %1632 = vmatprep.subr.mxu0 0.0
        %1633 = vmatpush1.xpose.msra.mxu0 0.0
        %1634 = vmatprep.subr.mxu0 0.0
        %1635 = vmatpush1.xpose.msra.mxu0 0.0
        %1636 = vmatprep.subr.mxu0 0.0
        %1637 = vmatpush1.xpose.msra.mxu0 0.0
        %1638 = vmatprep.subr.mxu0 0.0
        %1639 = vmatpush1.xpose.msra.mxu0 0.0
        %1640 = vmatprep.subr.mxu0 0.0
        %1641 = vmatpush1.xpose.msra.mxu0 0.0
        %1642 = vmatprep.subr.mxu0 0.0
        %1643 = vmatpush1.xpose.msra.mxu0 0.0
        %1644 = vmatprep.subr.mxu0 0.0
        %1645 = vmatpush1.xpose.msra.mxu0 0.0
        %1646 = vmatprep.subr.mxu0 0.0
        %1647 = vmatpush1.xpose.msra.mxu0 0.0
        %1648 = vmatprep.subr.mxu0 0.0
        %1649 = vmatpush1.xpose.msra.mxu0 0.0
        %1650 = vmatprep.subr.mxu0 0.0
        %1651 = vmatpush1.xpose.msra.mxu0 0.0
        %1652 = vmatprep.subr.mxu0 0.0
        %1653 = vmatpush1.xpose.msra.mxu0 0.0
        %1654 = vmatprep.subr.mxu0 %v395
        %1655 = vmatpush1.xpose.msra.mxu0 %v387
        %1656 = vmatprep.subr.mxu0 0.0
        %1657 = vmatpush2.xpose.msra.mxu0 0.0
        %1658 = vmatprep.subr.mxu0 0.0
        %1659 = vmatpush2.xpose.msra.mxu0 0.0
        %1660 = vmatprep.subr.mxu0 0.0
        %1661 = vmatpush2.xpose.msra.mxu0 0.0
        %1662 = vmatprep.subr.mxu0 0.0
        %1663 = vmatpush2.xpose.msra.mxu0 0.0
        %1664 = vmatprep.subr.mxu0 0.0
        %1665 = vmatpush2.xpose.msra.mxu0 0.0
        %1666 = vmatprep.subr.mxu0 0.0
        %1667 = vmatpush2.xpose.msra.mxu0 0.0
        %1668 = vmatprep.subr.mxu0 0.0
        %1669 = vmatpush2.xpose.msra.mxu0 0.0
        %1670 = vmatprep.subr.mxu0 0.0
        %1671 = vmatpush2.xpose.msra.mxu0 0.0
        %1672 = vmatprep.subr.mxu0 0.0
        %1673 = vmatpush2.xpose.msra.mxu0 0.0
        %1674 = vmatprep.subr.mxu0 0.0
        %1675 = vmatpush2.xpose.msra.mxu0 0.0
        %1676 = vmatprep.subr.mxu0 0.0
        %1677 = vmatpush2.xpose.msra.mxu0 0.0
        %1678 = vmatprep.subr.mxu0 0.0
        %1679 = vmatpush2.xpose.msra.mxu0 0.0
        %1680 = vmatprep.subr.mxu0 0.0
        %1681 = vmatpush2.xpose.msra.mxu0 0.0
        %1682 = vmatprep.subr.mxu0 0.0
        %1683 = vmatpush2.xpose.msra.mxu0 0.0
        %1684 = vmatprep.subr.mxu0 0.0
        %1685 = vmatpush2.xpose.msra.mxu0 0.0
        %1686 = vmatprep.subr.mxu0 0.0
        %1687 = vmatpush2.xpose.msra.mxu0 0.0
        %1688 = vmatprep.mubr.f32.mxu0 %v202
        %1689 = vmatmul.mubr.f32.gmra.mxu0 %v201
        %v1690 = vpop.f32.mrf.mxu0
        %v1691 = vadd.f32 %v1621, %v1690
        %v1692 = vpop.f32.mrf.mxu0
        %1693 = vdwg.mxu0
        %1694 = vmatprep.subr.mxu0 0.0
        %1695 = vmatpush1.xpose.msra.mxu0 0.0
        %1696 = vmatprep.subr.mxu0 0.0
        %1697 = vmatpush1.xpose.msra.mxu0 0.0
        %1698 = vmatprep.subr.mxu0 0.0
        %1699 = vmatpush1.xpose.msra.mxu0 0.0
        %1700 = vmatprep.subr.mxu0 0.0
        %1701 = vmatpush1.xpose.msra.mxu0 0.0
        %1702 = vmatprep.subr.mxu0 0.0
        %1703 = vmatpush1.xpose.msra.mxu0 0.0
        %1704 = vmatprep.subr.mxu0 0.0
        %1705 = vmatpush1.xpose.msra.mxu0 0.0
        %1706 = vmatprep.subr.mxu0 0.0
        %1707 = vmatpush1.xpose.msra.mxu0 0.0
        %1708 = vmatprep.subr.mxu0 0.0
        %1709 = vmatpush1.xpose.msra.mxu0 0.0
        %1710 = vmatprep.subr.mxu0 0.0
        %1711 = vmatpush1.xpose.msra.mxu0 0.0
        %1712 = vmatprep.subr.mxu0 0.0
        %1713 = vmatpush1.xpose.msra.mxu0 0.0
        %1714 = vmatprep.subr.mxu0 0.0
        %1715 = vmatpush1.xpose.msra.mxu0 0.0
        %1716 = vmatprep.subr.mxu0 0.0
        %1717 = vmatpush1.xpose.msra.mxu0 0.0
        %1718 = vmatprep.subr.mxu0 0.0
        %1719 = vmatpush1.xpose.msra.mxu0 0.0
        %1720 = vmatprep.subr.mxu0 0.0
        %1721 = vmatpush1.xpose.msra.mxu0 0.0
        %1722 = vmatprep.subr.mxu0 0.0
        %1723 = vmatpush1.xpose.msra.mxu0 0.0
        %1724 = vmatprep.subr.mxu0 %v396
        %1725 = vmatpush1.xpose.msra.mxu0 %v394
        %1726 = vmatprep.subr.mxu0 0.0
        %1727 = vmatpush2.xpose.msra.mxu0 0.0
        %1728 = vmatprep.subr.mxu0 0.0
        %1729 = vmatpush2.xpose.msra.mxu0 0.0
        %1730 = vmatprep.subr.mxu0 0.0
        %1731 = vmatpush2.xpose.msra.mxu0 0.0
        %1732 = vmatprep.subr.mxu0 0.0
        %1733 = vmatpush2.xpose.msra.mxu0 0.0
        %1734 = vmatprep.subr.mxu0 0.0
        %1735 = vmatpush2.xpose.msra.mxu0 0.0
        %1736 = vmatprep.subr.mxu0 0.0
        %1737 = vmatpush2.xpose.msra.mxu0 0.0
        %1738 = vmatprep.subr.mxu0 0.0
        %1739 = vmatpush2.xpose.msra.mxu0 0.0
        %1740 = vmatprep.subr.mxu0 0.0
        %1741 = vmatpush2.xpose.msra.mxu0 0.0
        %1742 = vmatprep.subr.mxu0 0.0
        %1743 = vmatpush2.xpose.msra.mxu0 0.0
        %1744 = vmatprep.subr.mxu0 0.0
        %1745 = vmatpush2.xpose.msra.mxu0 0.0
        %1746 = vmatprep.subr.mxu0 0.0
        %1747 = vmatpush2.xpose.msra.mxu0 0.0
        %1748 = vmatprep.subr.mxu0 0.0
        %1749 = vmatpush2.xpose.msra.mxu0 0.0
        %1750 = vmatprep.subr.mxu0 0.0
        %1751 = vmatpush2.xpose.msra.mxu0 0.0
        %1752 = vmatprep.subr.mxu0 0.0
        %1753 = vmatpush2.xpose.msra.mxu0 0.0
        %1754 = vmatprep.subr.mxu0 0.0
        %1755 = vmatpush2.xpose.msra.mxu0 0.0
        %1756 = vmatprep.subr.mxu0 0.0
        %1757 = vmatpush2.xpose.msra.mxu0 0.0
        %1758 = vmatprep.mubr.f32.mxu0 %v204
        %1759 = vmatmul.mubr.f32.gmra.mxu0 %v203
        %v1760 = vpop.f32.mrf.mxu0
        %v1761 = vadd.f32 %v1691, %v1760
        %v1762 = vpop.f32.mrf.mxu0
        %1763 = vdwg.mxu0
        %1764 = vmatprep.subr.mxu0 0.0
        %1765 = vmatpush1.xpose.msra.mxu0 0.0
        %1766 = vmatprep.subr.mxu0 0.0
        %1767 = vmatpush1.xpose.msra.mxu0 0.0
        %1768 = vmatprep.subr.mxu0 0.0
        %1769 = vmatpush1.xpose.msra.mxu0 0.0
        %1770 = vmatprep.subr.mxu0 0.0
        %1771 = vmatpush1.xpose.msra.mxu0 0.0
        %1772 = vmatprep.subr.mxu0 0.0
        %1773 = vmatpush1.xpose.msra.mxu0 0.0
        %1774 = vmatprep.subr.mxu0 0.0
        %1775 = vmatpush1.xpose.msra.mxu0 0.0
        %1776 = vmatprep.subr.mxu0 0.0
        %1777 = vmatpush1.xpose.msra.mxu0 0.0
        %1778 = vmatprep.subr.mxu0 0.0
        %1779 = vmatpush1.xpose.msra.mxu0 0.0
        %1780 = vmatprep.subr.mxu0 0.0
        %1781 = vmatpush1.xpose.msra.mxu0 0.0
        %1782 = vmatprep.subr.mxu0 0.0
        %1783 = vmatpush1.xpose.msra.mxu0 0.0
        %1784 = vmatprep.subr.mxu0 0.0
        %1785 = vmatpush1.xpose.msra.mxu0 0.0
        %1786 = vmatprep.subr.mxu0 0.0
        %1787 = vmatpush1.xpose.msra.mxu0 0.0
        %1788 = vmatprep.subr.mxu0 0.0
        %1789 = vmatpush1.xpose.msra.mxu0 0.0
        %1790 = vmatprep.subr.mxu0 0.0
        %1791 = vmatpush1.xpose.msra.mxu0 0.0
        %1792 = vmatprep.subr.mxu0 0.0
        %1793 = vmatpush1.xpose.msra.mxu0 0.0
        %1794 = vmatprep.subr.mxu0 %v412
        %1795 = vmatpush1.xpose.msra.mxu0 %v404
        %1796 = vmatprep.subr.mxu0 0.0
        %1797 = vmatpush2.xpose.msra.mxu0 0.0
        %1798 = vmatprep.subr.mxu0 0.0
        %1799 = vmatpush2.xpose.msra.mxu0 0.0
        %1800 = vmatprep.subr.mxu0 0.0
        %1801 = vmatpush2.xpose.msra.mxu0 0.0
        %1802 = vmatprep.subr.mxu0 0.0
        %1803 = vmatpush2.xpose.msra.mxu0 0.0
        %1804 = vmatprep.subr.mxu0 0.0
        %1805 = vmatpush2.xpose.msra.mxu0 0.0
        %1806 = vmatprep.subr.mxu0 0.0
        %1807 = vmatpush2.xpose.msra.mxu0 0.0
        %1808 = vmatprep.subr.mxu0 0.0
        %1809 = vmatpush2.xpose.msra.mxu0 0.0
        %1810 = vmatprep.subr.mxu0 0.0
        %1811 = vmatpush2.xpose.msra.mxu0 0.0
        %1812 = vmatprep.subr.mxu0 0.0
        %1813 = vmatpush2.xpose.msra.mxu0 0.0
        %1814 = vmatprep.subr.mxu0 0.0
        %1815 = vmatpush2.xpose.msra.mxu0 0.0
        %1816 = vmatprep.subr.mxu0 0.0
        %1817 = vmatpush2.xpose.msra.mxu0 0.0
        %1818 = vmatprep.subr.mxu0 0.0
        %1819 = vmatpush2.xpose.msra.mxu0 0.0
        %1820 = vmatprep.subr.mxu0 0.0
        %1821 = vmatpush2.xpose.msra.mxu0 0.0
        %1822 = vmatprep.subr.mxu0 0.0
        %1823 = vmatpush2.xpose.msra.mxu0 0.0
        %1824 = vmatprep.subr.mxu0 0.0
        %1825 = vmatpush2.xpose.msra.mxu0 0.0
        %1826 = vmatprep.subr.mxu0 0.0
        %1827 = vmatpush2.xpose.msra.mxu0 0.0
        %1828 = vmatprep.mubr.f32.mxu0 %v206
        %1829 = vmatmul.mubr.f32.gmra.mxu0 %v205
        %v1830 = vpop.f32.mrf.mxu0
        %v1831 = vadd.f32 %v1761, %v1830
        %v1832 = vpop.f32.mrf.mxu0
        %1833 = vdwg.mxu0
        %1834 = vmatprep.subr.mxu0 0.0
        %1835 = vmatpush1.xpose.msra.mxu0 0.0
        %1836 = vmatprep.subr.mxu0 0.0
        %1837 = vmatpush1.xpose.msra.mxu0 0.0
        %1838 = vmatprep.subr.mxu0 0.0
        %1839 = vmatpush1.xpose.msra.mxu0 0.0
        %1840 = vmatprep.subr.mxu0 0.0
        %1841 = vmatpush1.xpose.msra.mxu0 0.0
        %1842 = vmatprep.subr.mxu0 0.0
        %1843 = vmatpush1.xpose.msra.mxu0 0.0
        %1844 = vmatprep.subr.mxu0 0.0
        %1845 = vmatpush1.xpose.msra.mxu0 0.0
        %1846 = vmatprep.subr.mxu0 0.0
        %1847 = vmatpush1.xpose.msra.mxu0 0.0
        %1848 = vmatprep.subr.mxu0 0.0
        %1849 = vmatpush1.xpose.msra.mxu0 0.0
        %1850 = vmatprep.subr.mxu0 0.0
        %1851 = vmatpush1.xpose.msra.mxu0 0.0
        %1852 = vmatprep.subr.mxu0 0.0
        %1853 = vmatpush1.xpose.msra.mxu0 0.0
        %1854 = vmatprep.subr.mxu0 0.0
        %1855 = vmatpush1.xpose.msra.mxu0 0.0
        %1856 = vmatprep.subr.mxu0 0.0
        %1857 = vmatpush1.xpose.msra.mxu0 0.0
        %1858 = vmatprep.subr.mxu0 0.0
        %1859 = vmatpush1.xpose.msra.mxu0 0.0
        %1860 = vmatprep.subr.mxu0 0.0
        %1861 = vmatpush1.xpose.msra.mxu0 0.0
        %1862 = vmatprep.subr.mxu0 0.0
        %1863 = vmatpush1.xpose.msra.mxu0 0.0
        %1864 = vmatprep.subr.mxu0 %v413
        %1865 = vmatpush1.xpose.msra.mxu0 %v411
        %1866 = vmatprep.subr.mxu0 0.0
        %1867 = vmatpush2.xpose.msra.mxu0 0.0
        %1868 = vmatprep.subr.mxu0 0.0
        %1869 = vmatpush2.xpose.msra.mxu0 0.0
        %1870 = vmatprep.subr.mxu0 0.0
        %1871 = vmatpush2.xpose.msra.mxu0 0.0
        %1872 = vmatprep.subr.mxu0 0.0
        %1873 = vmatpush2.xpose.msra.mxu0 0.0
        %1874 = vmatprep.subr.mxu0 0.0
        %1875 = vmatpush2.xpose.msra.mxu0 0.0
        %1876 = vmatprep.subr.mxu0 0.0
        %1877 = vmatpush2.xpose.msra.mxu0 0.0
        %1878 = vmatprep.subr.mxu0 0.0
        %1879 = vmatpush2.xpose.msra.mxu0 0.0
        %1880 = vmatprep.subr.mxu0 0.0
        %1881 = vmatpush2.xpose.msra.mxu0 0.0
        %1882 = vmatprep.subr.mxu0 0.0
        %1883 = vmatpush2.xpose.msra.mxu0 0.0
        %1884 = vmatprep.subr.mxu0 0.0
        %1885 = vmatpush2.xpose.msra.mxu0 0.0
        %1886 = vmatprep.subr.mxu0 0.0
        %1887 = vmatpush2.xpose.msra.mxu0 0.0
        %1888 = vmatprep.subr.mxu0 0.0
        %1889 = vmatpush2.xpose.msra.mxu0 0.0
        %1890 = vmatprep.subr.mxu0 0.0
        %1891 = vmatpush2.xpose.msra.mxu0 0.0
        %1892 = vmatprep.subr.mxu0 0.0
        %1893 = vmatpush2.xpose.msra.mxu0 0.0
        %1894 = vmatprep.subr.mxu0 0.0
        %1895 = vmatpush2.xpose.msra.mxu0 0.0
        %1896 = vmatprep.subr.mxu0 0.0
        %1897 = vmatpush2.xpose.msra.mxu0 0.0
        %1898 = vmatprep.mubr.f32.mxu0 %v208
        %1899 = vmatmul.mubr.f32.gmra.mxu0 %v207
        %v1900 = vpop.f32.mrf.mxu0
        %v1901 = vadd.f32 %v1831, %v1900
        %v1902 = vpop.f32.mrf.mxu0
        %1903 = vdwg.mxu0
        %1904 = vmatprep.subr.mxu0 0.0
        %1905 = vmatpush1.xpose.msra.mxu0 0.0
        %1906 = vmatprep.subr.mxu0 0.0
        %1907 = vmatpush1.xpose.msra.mxu0 0.0
        %1908 = vmatprep.subr.mxu0 0.0
        %1909 = vmatpush1.xpose.msra.mxu0 0.0
        %1910 = vmatprep.subr.mxu0 0.0
        %1911 = vmatpush1.xpose.msra.mxu0 0.0
        %1912 = vmatprep.subr.mxu0 0.0
        %1913 = vmatpush1.xpose.msra.mxu0 0.0
        %1914 = vmatprep.subr.mxu0 0.0
        %1915 = vmatpush1.xpose.msra.mxu0 0.0
        %1916 = vmatprep.subr.mxu0 0.0
        %1917 = vmatpush1.xpose.msra.mxu0 0.0
        %1918 = vmatprep.subr.mxu0 0.0
        %1919 = vmatpush1.xpose.msra.mxu0 0.0
        %1920 = vmatprep.subr.mxu0 0.0
        %1921 = vmatpush1.xpose.msra.mxu0 0.0
        %1922 = vmatprep.subr.mxu0 0.0
        %1923 = vmatpush1.xpose.msra.mxu0 0.0
        %1924 = vmatprep.subr.mxu0 0.0
        %1925 = vmatpush1.xpose.msra.mxu0 0.0
        %1926 = vmatprep.subr.mxu0 0.0
        %1927 = vmatpush1.xpose.msra.mxu0 0.0
        %1928 = vmatprep.subr.mxu0 0.0
        %1929 = vmatpush1.xpose.msra.mxu0 0.0
        %1930 = vmatprep.subr.mxu0 0.0
        %1931 = vmatpush1.xpose.msra.mxu0 0.0
        %1932 = vmatprep.subr.mxu0 0.0
        %1933 = vmatpush1.xpose.msra.mxu0 0.0
        %1934 = vmatprep.subr.mxu0 %v429
        %1935 = vmatpush1.xpose.msra.mxu0 %v421
        %1936 = vmatprep.subr.mxu0 0.0
        %1937 = vmatpush2.xpose.msra.mxu0 0.0
        %1938 = vmatprep.subr.mxu0 0.0
        %1939 = vmatpush2.xpose.msra.mxu0 0.0
        %1940 = vmatprep.subr.mxu0 0.0
        %1941 = vmatpush2.xpose.msra.mxu0 0.0
        %1942 = vmatprep.subr.mxu0 0.0
        %1943 = vmatpush2.xpose.msra.mxu0 0.0
        %1944 = vmatprep.subr.mxu0 0.0
        %1945 = vmatpush2.xpose.msra.mxu0 0.0
        %1946 = vmatprep.subr.mxu0 0.0
        %1947 = vmatpush2.xpose.msra.mxu0 0.0
        %1948 = vmatprep.subr.mxu0 0.0
        %1949 = vmatpush2.xpose.msra.mxu0 0.0
        %1950 = vmatprep.subr.mxu0 0.0
        %1951 = vmatpush2.xpose.msra.mxu0 0.0
        %1952 = vmatprep.subr.mxu0 0.0
        %1953 = vmatpush2.xpose.msra.mxu0 0.0
        %1954 = vmatprep.subr.mxu0 0.0
        %1955 = vmatpush2.xpose.msra.mxu0 0.0
        %1956 = vmatprep.subr.mxu0 0.0
        %1957 = vmatpush2.xpose.msra.mxu0 0.0
        %1958 = vmatprep.subr.mxu0 0.0
        %1959 = vmatpush2.xpose.msra.mxu0 0.0
        %1960 = vmatprep.subr.mxu0 0.0
        %1961 = vmatpush2.xpose.msra.mxu0 0.0
        %1962 = vmatprep.subr.mxu0 0.0
        %1963 = vmatpush2.xpose.msra.mxu0 0.0
        %1964 = vmatprep.subr.mxu0 0.0
        %1965 = vmatpush2.xpose.msra.mxu0 0.0
        %1966 = vmatprep.subr.mxu0 0.0
        %1967 = vmatpush2.xpose.msra.mxu0 0.0
        %1968 = vmatprep.mubr.f32.mxu0 %v210
        %1969 = vmatmul.mubr.f32.gmra.mxu0 %v209
        %v1970 = vpop.f32.mrf.mxu0
        %v1971 = vadd.f32 %v1901, %v1970
        %v1972 = vpop.f32.mrf.mxu0
        %1973 = vdwg.mxu0
        %1974 = vmatprep.subr.mxu0 0.0
        %1975 = vmatpush1.xpose.msra.mxu0 0.0
        %1976 = vmatprep.subr.mxu0 0.0
        %1977 = vmatpush1.xpose.msra.mxu0 0.0
        %1978 = vmatprep.subr.mxu0 0.0
        %1979 = vmatpush1.xpose.msra.mxu0 0.0
        %1980 = vmatprep.subr.mxu0 0.0
        %1981 = vmatpush1.xpose.msra.mxu0 0.0
        %1982 = vmatprep.subr.mxu0 0.0
        %1983 = vmatpush1.xpose.msra.mxu0 0.0
        %1984 = vmatprep.subr.mxu0 0.0
        %1985 = vmatpush1.xpose.msra.mxu0 0.0
        %1986 = vmatprep.subr.mxu0 0.0
        %1987 = vmatpush1.xpose.msra.mxu0 0.0
        %1988 = vmatprep.subr.mxu0 0.0
        %1989 = vmatpush1.xpose.msra.mxu0 0.0
        %1990 = vmatprep.subr.mxu0 0.0
        %1991 = vmatpush1.xpose.msra.mxu0 0.0
        %1992 = vmatprep.subr.mxu0 0.0
        %1993 = vmatpush1.xpose.msra.mxu0 0.0
        %1994 = vmatprep.subr.mxu0 0.0
        %1995 = vmatpush1.xpose.msra.mxu0 0.0
        %1996 = vmatprep.subr.mxu0 0.0
        %1997 = vmatpush1.xpose.msra.mxu0 0.0
        %1998 = vmatprep.subr.mxu0 0.0
        %1999 = vmatpush1.xpose.msra.mxu0 0.0
        %2000 = vmatprep.subr.mxu0 0.0
        %2001 = vmatpush1.xpose.msra.mxu0 0.0
        %2002 = vmatprep.subr.mxu0 0.0
        %2003 = vmatpush1.xpose.msra.mxu0 0.0
        %2004 = vmatprep.subr.mxu0 %v430
        %2005 = vmatpush1.xpose.msra.mxu0 %v428
        %2006 = vmatprep.subr.mxu0 0.0
        %2007 = vmatpush2.xpose.msra.mxu0 0.0
        %2008 = vmatprep.subr.mxu0 0.0
        %2009 = vmatpush2.xpose.msra.mxu0 0.0
        %2010 = vmatprep.subr.mxu0 0.0
        %2011 = vmatpush2.xpose.msra.mxu0 0.0
        %2012 = vmatprep.subr.mxu0 0.0
        %2013 = vmatpush2.xpose.msra.mxu0 0.0
        %2014 = vmatprep.subr.mxu0 0.0
        %2015 = vmatpush2.xpose.msra.mxu0 0.0
        %2016 = vmatprep.subr.mxu0 0.0
        %2017 = vmatpush2.xpose.msra.mxu0 0.0
        %2018 = vmatprep.subr.mxu0 0.0
        %2019 = vmatpush2.xpose.msra.mxu0 0.0
        %2020 = vmatprep.subr.mxu0 0.0
        %2021 = vmatpush2.xpose.msra.mxu0 0.0
        %2022 = vmatprep.subr.mxu0 0.0
        %2023 = vmatpush2.xpose.msra.mxu0 0.0
        %2024 = vmatprep.subr.mxu0 0.0
        %2025 = vmatpush2.xpose.msra.mxu0 0.0
        %2026 = vmatprep.subr.mxu0 0.0
        %2027 = vmatpush2.xpose.msra.mxu0 0.0
        %2028 = vmatprep.subr.mxu0 0.0
        %2029 = vmatpush2.xpose.msra.mxu0 0.0
        %2030 = vmatprep.subr.mxu0 0.0
        %2031 = vmatpush2.xpose.msra.mxu0 0.0
        %2032 = vmatprep.subr.mxu0 0.0
        %2033 = vmatpush2.xpose.msra.mxu0 0.0
        %2034 = vmatprep.subr.mxu0 0.0
        %2035 = vmatpush2.xpose.msra.mxu0 0.0
        %2036 = vmatprep.subr.mxu0 0.0
        %2037 = vmatpush2.xpose.msra.mxu0 0.0
        %2038 = vmatprep.mubr.f32.mxu0 %v212
        %2039 = vmatmul.mubr.f32.gmra.mxu0 %v211
        %v2040 = vpop.f32.mrf.mxu0
        %v2041 = vadd.f32 %v1971, %v2040
        %v2042 = vpop.f32.mrf.mxu0
        %2043 = vdwg.mxu0
        %2044 = vmatprep.subr.mxu0 0.0
        %2045 = vmatpush1.xpose.msra.mxu0 0.0
        %2046 = vmatprep.subr.mxu0 0.0
        %2047 = vmatpush1.xpose.msra.mxu0 0.0
        %2048 = vmatprep.subr.mxu0 0.0
        %2049 = vmatpush1.xpose.msra.mxu0 0.0
        %2050 = vmatprep.subr.mxu0 0.0
        %2051 = vmatpush1.xpose.msra.mxu0 0.0
        %2052 = vmatprep.subr.mxu0 0.0
        %2053 = vmatpush1.xpose.msra.mxu0 0.0
        %2054 = vmatprep.subr.mxu0 0.0
        %2055 = vmatpush1.xpose.msra.mxu0 0.0
        %2056 = vmatprep.subr.mxu0 0.0
        %2057 = vmatpush1.xpose.msra.mxu0 0.0
        %2058 = vmatprep.subr.mxu0 0.0
        %2059 = vmatpush1.xpose.msra.mxu0 0.0
        %2060 = vmatprep.subr.mxu0 0.0
        %2061 = vmatpush1.xpose.msra.mxu0 0.0
        %2062 = vmatprep.subr.mxu0 0.0
        %2063 = vmatpush1.xpose.msra.mxu0 0.0
        %2064 = vmatprep.subr.mxu0 0.0
        %2065 = vmatpush1.xpose.msra.mxu0 0.0
        %2066 = vmatprep.subr.mxu0 0.0
        %2067 = vmatpush1.xpose.msra.mxu0 0.0
        %2068 = vmatprep.subr.mxu0 0.0
        %2069 = vmatpush1.xpose.msra.mxu0 0.0
        %2070 = vmatprep.subr.mxu0 0.0
        %2071 = vmatpush1.xpose.msra.mxu0 0.0
        %2072 = vmatprep.subr.mxu0 0.0
        %2073 = vmatpush1.xpose.msra.mxu0 0.0
        %2074 = vmatprep.subr.mxu0 %v446
        %2075 = vmatpush1.xpose.msra.mxu0 %v438
        %2076 = vmatprep.subr.mxu0 0.0
        %2077 = vmatpush2.xpose.msra.mxu0 0.0
        %2078 = vmatprep.subr.mxu0 0.0
        %2079 = vmatpush2.xpose.msra.mxu0 0.0
        %2080 = vmatprep.subr.mxu0 0.0
        %2081 = vmatpush2.xpose.msra.mxu0 0.0
        %2082 = vmatprep.subr.mxu0 0.0
        %2083 = vmatpush2.xpose.msra.mxu0 0.0
        %2084 = vmatprep.subr.mxu0 0.0
        %2085 = vmatpush2.xpose.msra.mxu0 0.0
        %2086 = vmatprep.subr.mxu0 0.0
        %2087 = vmatpush2.xpose.msra.mxu0 0.0
        %2088 = vmatprep.subr.mxu0 0.0
        %2089 = vmatpush2.xpose.msra.mxu0 0.0
        %2090 = vmatprep.subr.mxu0 0.0
        %2091 = vmatpush2.xpose.msra.mxu0 0.0
        %2092 = vmatprep.subr.mxu0 0.0
        %2093 = vmatpush2.xpose.msra.mxu0 0.0
        %2094 = vmatprep.subr.mxu0 0.0
        %2095 = vmatpush2.xpose.msra.mxu0 0.0
        %2096 = vmatprep.subr.mxu0 0.0
        %2097 = vmatpush2.xpose.msra.mxu0 0.0
        %2098 = vmatprep.subr.mxu0 0.0
        %2099 = vmatpush2.xpose.msra.mxu0 0.0
        %2100 = vmatprep.subr.mxu0 0.0
        %2101 = vmatpush2.xpose.msra.mxu0 0.0
        %2102 = vmatprep.subr.mxu0 0.0
        %2103 = vmatpush2.xpose.msra.mxu0 0.0
        %2104 = vmatprep.subr.mxu0 0.0
        %2105 = vmatpush2.xpose.msra.mxu0 0.0
        %2106 = vmatprep.subr.mxu0 0.0
        %2107 = vmatpush2.xpose.msra.mxu0 0.0
        %2108 = vmatprep.mubr.f32.mxu0 %v214
        %2109 = vmatmul.mubr.f32.gmra.mxu0 %v213
        %v2110 = vpop.f32.mrf.mxu0
        %v2111 = vadd.f32 %v2041, %v2110
        %v2112 = vpop.f32.mrf.mxu0
        %2113 = vdwg.mxu0
        %2114 = vmatprep.subr.mxu0 0.0
        %2115 = vmatpush1.xpose.msra.mxu0 0.0
        %2116 = vmatprep.subr.mxu0 0.0
        %2117 = vmatpush1.xpose.msra.mxu0 0.0
        %2118 = vmatprep.subr.mxu0 0.0
        %2119 = vmatpush1.xpose.msra.mxu0 0.0
        %2120 = vmatprep.subr.mxu0 0.0
        %2121 = vmatpush1.xpose.msra.mxu0 0.0
        %2122 = vmatprep.subr.mxu0 0.0
        %2123 = vmatpush1.xpose.msra.mxu0 0.0
        %2124 = vmatprep.subr.mxu0 0.0
        %2125 = vmatpush1.xpose.msra.mxu0 0.0
        %2126 = vmatprep.subr.mxu0 0.0
        %2127 = vmatpush1.xpose.msra.mxu0 0.0
        %2128 = vmatprep.subr.mxu0 0.0
        %2129 = vmatpush1.xpose.msra.mxu0 0.0
        %2130 = vmatprep.subr.mxu0 0.0
        %2131 = vmatpush1.xpose.msra.mxu0 0.0
        %2132 = vmatprep.subr.mxu0 0.0
        %2133 = vmatpush1.xpose.msra.mxu0 0.0
        %2134 = vmatprep.subr.mxu0 0.0
        %2135 = vmatpush1.xpose.msra.mxu0 0.0
        %2136 = vmatprep.subr.mxu0 0.0
        %2137 = vmatpush1.xpose.msra.mxu0 0.0
        %2138 = vmatprep.subr.mxu0 0.0
        %2139 = vmatpush1.xpose.msra.mxu0 0.0
        %2140 = vmatprep.subr.mxu0 0.0
        %2141 = vmatpush1.xpose.msra.mxu0 0.0
        %2142 = vmatprep.subr.mxu0 0.0
        %2143 = vmatpush1.xpose.msra.mxu0 0.0
        %2144 = vmatprep.subr.mxu0 %v447
        %2145 = vmatpush1.xpose.msra.mxu0 %v445
        %2146 = vmatprep.subr.mxu0 0.0
        %2147 = vmatpush2.xpose.msra.mxu0 0.0
        %2148 = vmatprep.subr.mxu0 0.0
        %2149 = vmatpush2.xpose.msra.mxu0 0.0
        %2150 = vmatprep.subr.mxu0 0.0
        %2151 = vmatpush2.xpose.msra.mxu0 0.0
        %2152 = vmatprep.subr.mxu0 0.0
        %2153 = vmatpush2.xpose.msra.mxu0 0.0
        %2154 = vmatprep.subr.mxu0 0.0
        %2155 = vmatpush2.xpose.msra.mxu0 0.0
        %2156 = vmatprep.subr.mxu0 0.0
        %2157 = vmatpush2.xpose.msra.mxu0 0.0
        %2158 = vmatprep.subr.mxu0 0.0
        %2159 = vmatpush2.xpose.msra.mxu0 0.0
        %2160 = vmatprep.subr.mxu0 0.0
        %2161 = vmatpush2.xpose.msra.mxu0 0.0
        %2162 = vmatprep.subr.mxu0 0.0
        %2163 = vmatpush2.xpose.msra.mxu0 0.0
        %2164 = vmatprep.subr.mxu0 0.0
        %2165 = vmatpush2.xpose.msra.mxu0 0.0
        %2166 = vmatprep.subr.mxu0 0.0
        %2167 = vmatpush2.xpose.msra.mxu0 0.0
        %2168 = vmatprep.subr.mxu0 0.0
        %2169 = vmatpush2.xpose.msra.mxu0 0.0
        %2170 = vmatprep.subr.mxu0 0.0
        %2171 = vmatpush2.xpose.msra.mxu0 0.0
        %2172 = vmatprep.subr.mxu0 0.0
        %2173 = vmatpush2.xpose.msra.mxu0 0.0
        %2174 = vmatprep.subr.mxu0 0.0
        %2175 = vmatpush2.xpose.msra.mxu0 0.0
        %2176 = vmatprep.subr.mxu0 0.0
        %2177 = vmatpush2.xpose.msra.mxu0 0.0
        %2178 = vmatprep.mubr.f32.mxu0 %v216
        %2179 = vmatmul.mubr.f32.gmra.mxu0 %v215
        %v2180 = vpop.f32.mrf.mxu0
        %v2181 = vadd.f32 %v2111, %v2180
        %v2182 = vpop.f32.mrf.mxu0
        %2183 = vdwg.mxu0
        %2184 = vmatprep.subr.mxu0 0.0
        %2185 = vmatpush1.xpose.msra.mxu0 0.0
        %2186 = vmatprep.subr.mxu0 0.0
        %2187 = vmatpush1.xpose.msra.mxu0 0.0
        %2188 = vmatprep.subr.mxu0 0.0
        %2189 = vmatpush1.xpose.msra.mxu0 0.0
        %2190 = vmatprep.subr.mxu0 0.0
        %2191 = vmatpush1.xpose.msra.mxu0 0.0
        %2192 = vmatprep.subr.mxu0 0.0
        %2193 = vmatpush1.xpose.msra.mxu0 0.0
        %2194 = vmatprep.subr.mxu0 0.0
        %2195 = vmatpush1.xpose.msra.mxu0 0.0
        %2196 = vmatprep.subr.mxu0 0.0
        %2197 = vmatpush1.xpose.msra.mxu0 0.0
        %2198 = vmatprep.subr.mxu0 0.0
        %2199 = vmatpush1.xpose.msra.mxu0 0.0
        %2200 = vmatprep.subr.mxu0 0.0
        %2201 = vmatpush1.xpose.msra.mxu0 0.0
        %2202 = vmatprep.subr.mxu0 0.0
        %2203 = vmatpush1.xpose.msra.mxu0 0.0
        %2204 = vmatprep.subr.mxu0 0.0
        %2205 = vmatpush1.xpose.msra.mxu0 0.0
        %2206 = vmatprep.subr.mxu0 0.0
        %2207 = vmatpush1.xpose.msra.mxu0 0.0
        %2208 = vmatprep.subr.mxu0 0.0
        %2209 = vmatpush1.xpose.msra.mxu0 0.0
        %2210 = vmatprep.subr.mxu0 0.0
        %2211 = vmatpush1.xpose.msra.mxu0 0.0
        %2212 = vmatprep.subr.mxu0 0.0
        %2213 = vmatpush1.xpose.msra.mxu0 0.0
        %2214 = vmatprep.subr.mxu0 0.0
        %2215 = vmatpush1.xpose.msra.mxu0 %v454
        %2216 = vmatprep.subr.mxu0 0.0
        %2217 = vmatpush2.xpose.msra.mxu0 0.0
        %2218 = vmatprep.subr.mxu0 0.0
        %2219 = vmatpush2.xpose.msra.mxu0 0.0
        %2220 = vmatprep.subr.mxu0 0.0
        %2221 = vmatpush2.xpose.msra.mxu0 0.0
        %2222 = vmatprep.subr.mxu0 0.0
        %2223 = vmatpush2.xpose.msra.mxu0 0.0
        %2224 = vmatprep.subr.mxu0 0.0
        %2225 = vmatpush2.xpose.msra.mxu0 0.0
        %2226 = vmatprep.subr.mxu0 0.0
        %2227 = vmatpush2.xpose.msra.mxu0 0.0
        %2228 = vmatprep.subr.mxu0 0.0
        %2229 = vmatpush2.xpose.msra.mxu0 0.0
        %2230 = vmatprep.subr.mxu0 0.0
        %2231 = vmatpush2.xpose.msra.mxu0 0.0
        %2232 = vmatprep.subr.mxu0 0.0
        %2233 = vmatpush2.xpose.msra.mxu0 0.0
        %2234 = vmatprep.subr.mxu0 0.0
        %2235 = vmatpush2.xpose.msra.mxu0 0.0
        %2236 = vmatprep.subr.mxu0 0.0
        %2237 = vmatpush2.xpose.msra.mxu0 0.0
        %2238 = vmatprep.subr.mxu0 0.0
        %2239 = vmatpush2.xpose.msra.mxu0 0.0
        %2240 = vmatprep.subr.mxu0 0.0
        %2241 = vmatpush2.xpose.msra.mxu0 0.0
        %2242 = vmatprep.subr.mxu0 0.0
        %2243 = vmatpush2.xpose.msra.mxu0 0.0
        %2244 = vmatprep.subr.mxu0 0.0
        %2245 = vmatpush2.xpose.msra.mxu0 0.0
        %2246 = vmatprep.subr.mxu0 0.0
        %2247 = vmatpush2.xpose.msra.mxu0 0.0
        %2248 = vmatprep.mubr.f32.mxu0 0.0
        %2249 = vmatmul.mubr.f32.gmra.mxu0 %v217
        %v2250 = vpop.f32.mrf.mxu0
        %v2251 = vadd.f32 %v2181, %v2250
        %v2252 = vpop.f32.mrf.mxu0
        %2253 = vdwg.mxu0
        %v2254 = vmax.f32 %v2251, 0.0
        %v2255 = vld [vmem:[%s2] sm:$0x3]
        %2257 = vset.pattern.permute.xlu0 0
        %2258 = vperm.xlu0 %2257, %v2254
        %v2259 = vpop.permute.xlu0 %2258
        %v2261 = vlaneseq
        %v2262 = vshrl.u32 %v2261, 7
        %v2263 = vsub.s32 0, %v2262
        %v2264 = vrot.slane %v2255, %v2263
        %v2265 = vmul.f32 %v2259, %v2264
        %2266 = vset.pattern.permute.xlu0 1
        %2267 = vperm.xlu0 %2266, %v2254
        %v2268 = vpop.permute.xlu0 %2267
        %v2270 = vlaneseq
        %v2271 = vshrl.u32 %v2270, 7
        %v2272 = vsub.s32 1, %v2271
        %v2273 = vrot.slane %v2255, %v2272
        %v2274 = vmul.f32 %v2268, %v2273
        %v2275 = vadd.f32 %v2265, %v2274
        %v2276 = vxor.u32 %v2275, 2147483648
        %v2277 = vmul.f32 %v2276, 1.442695
        %v2278 = vpow.pop %v2277
        %v2279 = vadd.f32 %v2278, 1.0
        %v2280 = vrcp.pop %v2279
        %v2281 = vmul.f32 1.0, %v2280
        %vm2282 = vcmask 261120
        %2283 = vst.msk [vmem:[%s163] sm:$0xff] %vm2282, %v2281
        %s2284 = sand.u32 %s93, 1
        %s2285 = scalar_lea.sflag [#allocation3], %s2284
        %s2286 = sand.u32 %s93, 1
        %s2287 = smul.addr %s2286, 8
        %s2288 = scalar_lea.vmem [#allocation2], %s2287
        // Predicated region
        $region33: #{multi_spectral_attention.1} parent=31 // pred_check
          %p2289 = pneg %p103
        $region34: #{multi_spectral_attention.1} parent=31 // pred_check_branch
          %2291 = sbr.rel (%p2289) target = $region36
        $region35: #{multi_spectral_attention.1} parent=31 // pred_region
          %s2293 = ssub.s32 128, 128
          %2294 = vsyncadd %s2285, %s2293
          %s2295 = smul.addr %s17, 128
          %s2296 = scalar_lea.hbm %s3, %s2295
          %s2298 = sshll.u32 %s2288, 4
          %s2299 = int_to_ptr.vmem [resolvable:$true] %s2298
          %2301 = dma.vmem_to_hbm [thread:$0]  %s2299, 128, %s2296, %s2285
        $region36: #{multi_spectral_attention.1} parent=31 // pred_fallthru
          _
      $region32: #{multi_spectral_attention.1} parent=5 // pred_fallthru
        _
      %p2302 = scmp.le.s32.totalorder 2, %s12
      // Predicated region
      $region37: #{multi_spectral_attention.1} parent=5 // pred_check
        %p2303 = pneg %p2302
      $region38: #{multi_spectral_attention.1} parent=5 // pred_check_branch
        %2305 = sbr.rel (%p2303) target = $region40
      $region39: #{multi_spectral_attention.1} parent=5 // pred_region
        %s2306 = ssub.s32 %s12, 2
        // Predicated region
        $region41: #{multi_spectral_attention.1} parent=39 // pred_check
          %p2307 = pneg %p109
        $region42: #{multi_spectral_attention.1} parent=39 // pred_check_branch
          %2309 = sbr.rel (%p2307) target = $region44
        $region43: #{multi_spectral_attention.1} parent=39 // pred_region
          %s2310 = sand.u32 %s94, 1
          %s2311 = scalar_lea.sflag [#allocation3], %s2310
          %s2312 = sand.u32 %s94, 1
          %s2313 = smul.addr %s2312, 8
          %s2314 = scalar_lea.vmem [#allocation2], %s2313
          %2315 = dma.done %s2311, 128
        $region44: #{multi_spectral_attention.1} parent=39 // pred_fallthru
          _
      $region40: #{multi_spectral_attention.1} parent=5 // pred_fallthru
        _
    $region6: #{multi_spectral_attention.1} parent=1 // loop_footer
      %s16 = sadd.s32 1, %s12
    $region7: #{multi_spectral_attention.1} parent=1 // loop_footer_branch
      %11 = sbr.rel target = $region3
    $region8: #{multi_spectral_attention.1} parent=1 // loop_exit
      _
    %2316 = vsyncpa [#allocation3], 1
    %s2317 = scalar_lea.sflag [#allocation3], 1
    %2318 = vsyncpa %s2317, 1

</llo_original>
